<compile_context>
chip_gen: v7x
topology: tpu7x:2x2x1
jax: 0.10.0
libtpu: 0.0.40
codegen_flags: <defaults>
</compile_context>

<pallas_src>
import functools
import math

import jax
import jax.numpy as jnp
from jax.experimental import pallas as pl
from jax.experimental.pallas import tpu as pltpu


def attention_kernel(x_ref, wqkv_ref, bqkv_ref, o_ref, ctx_ref, *,
                     num_heads, head_dim, mxu_dtype):
    # x_ref:    (bblk, S, H)   batch block of hidden_states (input dtype)
    # wqkv_ref: (H, 3H)        [Wq^T/sqrt(dh) | Wk^T | Wv^T]  (mxu_dtype)
    # bqkv_ref: (1, 3H)        [bq/sqrt(dh) | bk | bv]        (f32)
    # o_ref:    (bblk, S, H)   output block (input dtype)
    # ctx_ref:  (bblk, S, H)   f32 VMEM scratch slab for per-head contexts
    bblk, S, H = x_ref.shape

    # Fused QKV projection: one MXU pass, f32 accumulation, bias added in f32.
    x = x_ref[...].reshape(bblk * S, H).astype(mxu_dtype)
    qkv = jnp.dot(x, wqkv_ref[...], preferred_element_type=jnp.float32)
    qkv = qkv + bqkv_ref[...]                                   # (1, 3H) broadcast

    # 1/sqrt(dh) is already folded into the query weights/bias on the host.
    q = qkv[:, 0 * H:1 * H].astype(mxu_dtype)
    k = qkv[:, 1 * H:2 * H].astype(mxu_dtype)
    v = qkv[:, 2 * H:3 * H].astype(mxu_dtype)

    # Static unroll over heads (num_heads is small and static).
    for h in range(num_heads):
        sl = slice(h * head_dim, (h + 1) * head_dim)
        qh = q[:, sl].reshape(bblk, S, head_dim)
        kh = k[:, sl].reshape(bblk, S, head_dim)
        vh = v[:, sl].reshape(bblk, S, head_dim)

        # Contracting-dim einsum: no explicit K transpose materialization.
        s = jnp.einsum('bqd,bkd->bqk', qh, kh,
                       preferred_element_type=jnp.float32)      # (bblk, S, S) f32
        m = jnp.max(s, axis=-1, keepdims=True)
        e = jnp.exp(s - m)
        denom = jnp.sum(e, axis=-1, keepdims=True)
        p = e * pl.reciprocal(denom, approx=False)              # exact; EUP slot

        ctx_h = jnp.einsum('bqk,bkd->bqd', p.astype(mxu_dtype), vh,
                           preferred_element_type=jnp.float32)  # (bblk, S, dh)

        # Write straight into the f32 VMEM slab: no concat, no all-heads-live
        # register pressure.
        ctx_ref[:, :, sl] = ctx_h

    # Single cast + full-block store.
    o_ref[...] = ctx_ref[...].astype(o_ref.dtype)


def _pick_batch_block(B, S, H, rows_target=256,
                      vmem_budget_bytes=48 * 1024 * 1024):
    """Batch block so the fused QKV matmul sees >= rows_target rows (fills the
    256-row MXU on v6e/v7x; 128 already fills v5e's 4x128^2) while staying
    within a conservative VMEM budget.  No artificial splitting just to create
    extra grid steps: on v5e/v6e (single TensorCore) they are pure overhead."""
    divisors = [d for d in range(1, B + 1) if B % d == 0]

    def vmem_bytes(d):
        rows = d * S
        return 4 * (
            2 * 2 * rows * H        # x and o blocks, double-buffered
            + rows * 3 * H          # fused qkv activations (f32)
            + rows * H              # ctx scratch slab (f32)
            + rows * S              # one head's (rows, S) scores/probs (f32)
            + H * 3 * H + 3 * H     # fused weight + bias
        )

    bblk = B
    for d in divisors:
        if d * S >= rows_target:
            bblk = d
            break
    while bblk > 1 and vmem_bytes(bblk) > vmem_budget_bytes:
        bblk = max(d for d in divisors if d < bblk)
    return bblk


def trans_self_attention(hidden_states, params, num_heads, *, use_bf16_mxu=False):
    B, S, H = hidden_states.shape
    assert H % num_heads == 0
    head_dim = H // num_heads
    wq, bq, wk, bk, wv, bv = params

    dt = hidden_states.dtype
    mxu_dtype = jnp.bfloat16 if use_bf16_mxu else dt

    # Host-side glue (free): fuse the three nn.Linear weights into one (H, 3H)
    # matrix (pre-transposed so y = x @ W + b), fold 1/sqrt(dh) into the query
    # columns AND query bias, and concatenate the biases.
    inv_sqrt_d = 1.0 / math.sqrt(head_dim)
    wqkv = jnp.concatenate([wq.T * inv_sqrt_d, wk.T, wv.T], axis=1)     # (H, 3H)
    bqkv = jnp.concatenate([bq * inv_sqrt_d, bk, bv])[None, :]          # (1, 3H)
    wqkv = wqkv.astype(mxu_dtype)            # bf16 weights when feeding MXU in bf16
    bqkv = bqkv.astype(jnp.float32)          # bias added after f32 accumulation

    bblk = _pick_batch_block(B, S, H)
    grid = (B // bblk,)

    kernel = functools.partial(attention_kernel, num_heads=num_heads,
                               head_dim=head_dim, mxu_dtype=mxu_dtype)

    return pl.pallas_call(
        kernel,
        out_shape=jax.ShapeDtypeStruct((B, S, H), dt),
        grid_spec=pltpu.PrefetchScalarGridSpec(
            num_scalar_prefetch=0,
            grid=grid,
            in_specs=[
                pl.BlockSpec((bblk, S, H), lambda b: (b, 0, 0)),   # x block
                pl.BlockSpec((H, 3 * H), lambda b: (0, 0)),        # fused W (invariant)
                pl.BlockSpec((1, 3 * H), lambda b: (0, 0)),        # fused b (invariant)
            ],
            out_specs=pl.BlockSpec((bblk, S, H), lambda b: (b, 0, 0)),
            scratch_shapes=[pltpu.VMEM((bblk, S, H), jnp.float32)],
        ),
        compiler_params=pltpu.CompilerParams(
            dimension_semantics=("parallel",),
            vmem_limit_bytes=64 * 1024 * 1024,
        ),
    )(hidden_states, wqkv, bqkv)


def reference(hidden_states, params, num_heads):
    # Pure-JAX reference of the PyTorch forward (eval mode: dropout = identity).
    B, S, H = hidden_states.shape
    dh = H // num_heads
    wq, bq, wk, bk, wv, bv = params
    q = hidden_states @ wq.T + bq
    k = hidden_states @ wk.T + bk
    v = hidden_states @ wv.T + bv

    def split(x):
        return x.reshape(B, S, num_heads, dh).transpose(0, 2, 1, 3)  # (B,nh,S,dh)

    qh, kh, vh = split(q), split(k), split(v)
    scores = jnp.einsum('bhqd,bhkd->bhqk', qh, kh) / math.sqrt(dh)
    probs = jax.nn.softmax(scores, axis=-1)
    ctx = jnp.einsum('bhqk,bhkd->bhqd', probs, vh)
    return ctx.transpose(0, 2, 1, 3).reshape(B, S, H)


if __name__ == "__main__":
    num_attention_heads = 4
    hidden_size = 32
    dropout_prob = 0.1  # inference: identity
    B, S = 2, 8

    key = jax.random.PRNGKey(0)
    k_x, k_wq, k_bq, k_wk, k_bk, k_wv, k_bv = jax.random.split(key, 7)

    hidden_states = jax.random.normal(k_x, (B, S, hidden_size), dtype=jnp.float32)

    # nn.Linear(hidden, hidden): weight (out, in), bias (out,)
    bound = 1.0 / math.sqrt(hidden_size)
    init_w = lambda k: jax.random.uniform(k, (hidden_size, hidden_size),
                                          jnp.float32, -bound, bound)
    init_b = lambda k: jax.random.uniform(k, (hidden_size,),
                                          jnp.float32, -bound, bound)
    params = (init_w(k_wq), init_b(k_bq),
              init_w(k_wk), init_b(k_bk),
              init_w(k_wv), init_b(k_bv))

    ref = reference(hidden_states, params, num_attention_heads)

    # 1) Exact-dtype path (f32 MXU, exact softmax reciprocal): tight tolerance.
    out = trans_self_attention(hidden_states, params, num_attention_heads)
    out = jax.block_until_ready(out)
    assert out.shape == (B, S, hidden_size)
    err = jnp.max(jnp.abs(out - ref))
    assert jnp.allclose(out, ref, atol=5e-5, rtol=5e-5), f"f32 max abs err {err}"

    # 2) bf16-fed MXU path (v6e/v7x recommendation): f32 accumulation, looser
    #    tolerance for the usual bf16-attention drift.
    out_bf16 = trans_self_attention(hidden_states, params, num_attention_heads,
                                    use_bf16_mxu=True)
    out_bf16 = jax.block_until_ready(out_bf16)
    err_bf16 = jnp.max(jnp.abs(out_bf16 - ref))
    assert jnp.allclose(out_bf16, ref, atol=5e-2, rtol=5e-2), \
        f"bf16 max abs err {err_bf16}"

    print("KERNEL_OK")
</pallas_src>

<mosaic_0001>
module attributes {stable_mosaic.version = 11 : i64} {
  func.func @attention_kernel(%arg0: i32, %arg1: memref<2x8x32xf32, #tpu.memory_space<vmem>>, %arg2: memref<32x96xf32, #tpu.memory_space<vmem>>, %arg3: memref<1x96xf32, #tpu.memory_space<vmem>>, %arg4: memref<2x8x32xf32, #tpu.memory_space<vmem>>, %arg5: memref<2x8x32xf32, #tpu.memory_space<vmem>>) attributes {dimension_semantics = [#tpu.dimension_semantics<parallel>], iteration_bounds = array<i64: 1>, scalar_prefetch = 0 : i64, scratch_operands = 1 : i64, tpu.core_type = #tpu.core_type<tc>, window_params = [{transform_indices = @transform_0, window_bounds = array<i64: 2, 8, 32>}, {pipeline_mode = #tpu.pipeline_mode<synchronous>, transform_indices = @transform_1, window_bounds = array<i64: 32, 96>}, {pipeline_mode = #tpu.pipeline_mode<synchronous>, transform_indices = @transform_2, window_bounds = array<i64: 1, 96>}, {transform_indices = @transform_3, window_bounds = array<i64: 2, 8, 32>}]} {
    %c0 = arith.constant 0 : index
    %c0_0 = arith.constant 0 : index
    %c0_1 = arith.constant 0 : index
    %0 = vector.load %arg1[%c0, %c0_0, %c0_1] : memref<2x8x32xf32, #tpu.memory_space<vmem>>, vector<2x8x32xf32>
    %1 = vector.shape_cast %0 : vector<2x8x32xf32> to vector<16x32xf32>
    %c0_2 = arith.constant 0 : index
    %c0_3 = arith.constant 0 : index
    %2 = vector.load %arg2[%c0_2, %c0_3] : memref<32x96xf32, #tpu.memory_space<vmem>>, vector<32x96xf32>
    %cst = arith.constant dense<0.000000e+00> : vector<16x96xf32>
    %3 = tpu.matmul %1, %2, %cst {dimension_numbers = #tpu.dot_dimension_numbers<[1], [0], [0], [1], [0, 0, 1, 1], [], []>} : vector<16x32xf32>, vector<32x96xf32>, vector<16x96xf32> -> vector<16x96xf32>
    %c0_4 = arith.constant 0 : index
    %c0_5 = arith.constant 0 : index
    %4 = vector.load %arg3[%c0_4, %c0_5] : memref<1x96xf32, #tpu.memory_space<vmem>>, vector<1x96xf32>
    %5 = vector.broadcast %4 : vector<1x96xf32> to vector<16x96xf32>
    %6 = arith.addf %3, %5 : vector<16x96xf32>
    %7 = vector.extract_strided_slice %6 {offsets = [0, 0], sizes = [16, 32], strides = [1, 1]} : vector<16x96xf32> to vector<16x32xf32>
    %8 = vector.extract_strided_slice %6 {offsets = [0, 32], sizes = [16, 32], strides = [1, 1]} : vector<16x96xf32> to vector<16x32xf32>
    %9 = vector.extract_strided_slice %6 {offsets = [0, 64], sizes = [16, 32], strides = [1, 1]} : vector<16x96xf32> to vector<16x32xf32>
    %10 = vector.extract_strided_slice %7 {offsets = [0, 0], sizes = [16, 8], strides = [1, 1]} : vector<16x32xf32> to vector<16x8xf32>
    %11 = vector.shape_cast %10 : vector<16x8xf32> to vector<2x8x8xf32>
    %12 = vector.extract_strided_slice %8 {offsets = [0, 0], sizes = [16, 8], strides = [1, 1]} : vector<16x32xf32> to vector<16x8xf32>
    %13 = vector.shape_cast %12 : vector<16x8xf32> to vector<2x8x8xf32>
    %14 = vector.extract_strided_slice %9 {offsets = [0, 0], sizes = [16, 8], strides = [1, 1]} : vector<16x32xf32> to vector<16x8xf32>
    %15 = vector.shape_cast %14 : vector<16x8xf32> to vector<2x8x8xf32>
    "tpu.trace_start"() <{level = 10 : i32, message = "bqd,bkd->bqk"}> : () -> ()
    %cst_6 = arith.constant dense<0.000000e+00> : vector<2x8x8xf32>
    %16 = tpu.matmul %11, %13, %cst_6 {dimension_numbers = #tpu.dot_dimension_numbers<[2], [2], [1], [1], [0, 0, 0, 1, 1, 1], [0], [0]>} : vector<2x8x8xf32>, vector<2x8x8xf32>, vector<2x8x8xf32> -> vector<2x8x8xf32>
    "tpu.trace_stop"() : () -> ()
    %cst_7 = arith.constant dense<0xFF800000> : vector<2x8xf32>
    %17 = vector.multi_reduction <maximumf>, %16, %cst_7 [2] : vector<2x8x8xf32> to vector<2x8xf32>
    %18 = vector.shape_cast %17 : vector<2x8xf32> to vector<2x8x1xf32>
    %19 = vector.broadcast %18 : vector<2x8x1xf32> to vector<2x8x8xf32>
    %20 = arith.subf %16, %19 : vector<2x8x8xf32>
    %21 = math.exp %20 : vector<2x8x8xf32>
    %cst_8 = arith.constant dense<0.000000e+00> : vector<2x8xf32>
    %22 = vector.multi_reduction <add>, %21, %cst_8 [2] : vector<2x8x8xf32> to vector<2x8xf32>
    %23 = vector.shape_cast %22 : vector<2x8xf32> to vector<2x8x1xf32>
    %24 = tpu.reciprocal %23 : vector<2x8x1xf32> -> vector<2x8x1xf32>
    %25 = vector.broadcast %24 : vector<2x8x1xf32> to vector<2x8x8xf32>
    %26 = arith.mulf %21, %25 : vector<2x8x8xf32>
    "tpu.trace_start"() <{level = 10 : i32, message = "bqk,bkd->bqd"}> : () -> ()
    %cst_9 = arith.constant dense<0.000000e+00> : vector<2x8x8xf32>
    %27 = tpu.matmul %26, %15, %cst_9 {dimension_numbers = #tpu.dot_dimension_numbers<[2], [1], [1], [2], [0, 0, 0, 1, 1, 2], [0], [0]>} : vector<2x8x8xf32>, vector<2x8x8xf32>, vector<2x8x8xf32> -> vector<2x8x8xf32>
    "tpu.trace_stop"() : () -> ()
    %c0_10 = arith.constant 0 : index
    %c0_11 = arith.constant 0 : index
    %c0_12 = arith.constant 0 : index
    %28 = vector.load %arg5[%c0_10, %c0_11, %c0_12] : memref<2x8x32xf32, #tpu.memory_space<vmem>>, vector<2x8x8xf32>
    tpu.vector_store %arg5[%c0_10, %c0_11, %c0_12], %27 {strides = array<i32>} : memref<2x8x32xf32, #tpu.memory_space<vmem>>, vector<2x8x8xf32>,
    %29 = vector.extract_strided_slice %7 {offsets = [0, 8], sizes = [16, 8], strides = [1, 1]} : vector<16x32xf32> to vector<16x8xf32>
    %30 = vector.shape_cast %29 : vector<16x8xf32> to vector<2x8x8xf32>
    %31 = vector.extract_strided_slice %8 {offsets = [0, 8], sizes = [16, 8], strides = [1, 1]} : vector<16x32xf32> to vector<16x8xf32>
    %32 = vector.shape_cast %31 : vector<16x8xf32> to vector<2x8x8xf32>
    %33 = vector.extract_strided_slice %9 {offsets = [0, 8], sizes = [16, 8], strides = [1, 1]} : vector<16x32xf32> to vector<16x8xf32>
    %34 = vector.shape_cast %33 : vector<16x8xf32> to vector<2x8x8xf32>
    "tpu.trace_start"() <{level = 10 : i32, message = "bqd,bkd->bqk"}> : () -> ()
    %cst_13 = arith.constant dense<0.000000e+00> : vector<2x8x8xf32>
    %35 = tpu.matmul %30, %32, %cst_13 {dimension_numbers = #tpu.dot_dimension_numbers<[2], [2], [1], [1], [0, 0, 0, 1, 1, 1], [0], [0]>} : vector<2x8x8xf32>, vector<2x8x8xf32>, vector<2x8x8xf32> -> vector<2x8x8xf32>
    "tpu.trace_stop"() : () -> ()
    %cst_14 = arith.constant dense<0xFF800000> : vector<2x8xf32>
    %36 = vector.multi_reduction <maximumf>, %35, %cst_14 [2] : vector<2x8x8xf32> to vector<2x8xf32>
    %37 = vector.shape_cast %36 : vector<2x8xf32> to vector<2x8x1xf32>
    %38 = vector.broadcast %37 : vector<2x8x1xf32> to vector<2x8x8xf32>
    %39 = arith.subf %35, %38 : vector<2x8x8xf32>
    %40 = math.exp %39 : vector<2x8x8xf32>
    %cst_15 = arith.constant dense<0.000000e+00> : vector<2x8xf32>
    %41 = vector.multi_reduction <add>, %40, %cst_15 [2] : vector<2x8x8xf32> to vector<2x8xf32>
    %42 = vector.shape_cast %41 : vector<2x8xf32> to vector<2x8x1xf32>
    %43 = tpu.reciprocal %42 : vector<2x8x1xf32> -> vector<2x8x1xf32>
    %44 = vector.broadcast %43 : vector<2x8x1xf32> to vector<2x8x8xf32>
    %45 = arith.mulf %40, %44 : vector<2x8x8xf32>
    "tpu.trace_start"() <{level = 10 : i32, message = "bqk,bkd->bqd"}> : () -> ()
    %cst_16 = arith.constant dense<0.000000e+00> : vector<2x8x8xf32>
    %46 = tpu.matmul %45, %34, %cst_16 {dimension_numbers = #tpu.dot_dimension_numbers<[2], [1], [1], [2], [0, 0, 0, 1, 1, 2], [0], [0]>} : vector<2x8x8xf32>, vector<2x8x8xf32>, vector<2x8x8xf32> -> vector<2x8x8xf32>
    "tpu.trace_stop"() : () -> ()
    %c0_17 = arith.constant 0 : index
    %c0_18 = arith.constant 0 : index
    %c8 = arith.constant 8 : index
    %47 = vector.load %arg5[%c0_17, %c0_18, %c8] : memref<2x8x32xf32, #tpu.memory_space<vmem>>, vector<2x8x8xf32>
    tpu.vector_store %arg5[%c0_17, %c0_18, %c8], %46 {strides = array<i32>} : memref<2x8x32xf32, #tpu.memory_space<vmem>>, vector<2x8x8xf32>,
    %48 = vector.extract_strided_slice %7 {offsets = [0, 16], sizes = [16, 8], strides = [1, 1]} : vector<16x32xf32> to vector<16x8xf32>
    %49 = vector.shape_cast %48 : vector<16x8xf32> to vector<2x8x8xf32>
    %50 = vector.extract_strided_slice %8 {offsets = [0, 16], sizes = [16, 8], strides = [1, 1]} : vector<16x32xf32> to vector<16x8xf32>
    %51 = vector.shape_cast %50 : vector<16x8xf32> to vector<2x8x8xf32>
    %52 = vector.extract_strided_slice %9 {offsets = [0, 16], sizes = [16, 8], strides = [1, 1]} : vector<16x32xf32> to vector<16x8xf32>
    %53 = vector.shape_cast %52 : vector<16x8xf32> to vector<2x8x8xf32>
    "tpu.trace_start"() <{level = 10 : i32, message = "bqd,bkd->bqk"}> : () -> ()
    %cst_19 = arith.constant dense<0.000000e+00> : vector<2x8x8xf32>
    %54 = tpu.matmul %49, %51, %cst_19 {dimension_numbers = #tpu.dot_dimension_numbers<[2], [2], [1], [1], [0, 0, 0, 1, 1, 1], [0], [0]>} : vector<2x8x8xf32>, vector<2x8x8xf32>, vector<2x8x8xf32> -> vector<2x8x8xf32>
    "tpu.trace_stop"() : () -> ()
    %cst_20 = arith.constant dense<0xFF800000> : vector<2x8xf32>
    %55 = vector.multi_reduction <maximumf>, %54, %cst_20 [2] : vector<2x8x8xf32> to vector<2x8xf32>
    %56 = vector.shape_cast %55 : vector<2x8xf32> to vector<2x8x1xf32>
    %57 = vector.broadcast %56 : vector<2x8x1xf32> to vector<2x8x8xf32>
    %58 = arith.subf %54, %57 : vector<2x8x8xf32>
    %59 = math.exp %58 : vector<2x8x8xf32>
    %cst_21 = arith.constant dense<0.000000e+00> : vector<2x8xf32>
    %60 = vector.multi_reduction <add>, %59, %cst_21 [2] : vector<2x8x8xf32> to vector<2x8xf32>
    %61 = vector.shape_cast %60 : vector<2x8xf32> to vector<2x8x1xf32>
    %62 = tpu.reciprocal %61 : vector<2x8x1xf32> -> vector<2x8x1xf32>
    %63 = vector.broadcast %62 : vector<2x8x1xf32> to vector<2x8x8xf32>
    %64 = arith.mulf %59, %63 : vector<2x8x8xf32>
    "tpu.trace_start"() <{level = 10 : i32, message = "bqk,bkd->bqd"}> : () -> ()
    %cst_22 = arith.constant dense<0.000000e+00> : vector<2x8x8xf32>
    %65 = tpu.matmul %64, %53, %cst_22 {dimension_numbers = #tpu.dot_dimension_numbers<[2], [1], [1], [2], [0, 0, 0, 1, 1, 2], [0], [0]>} : vector<2x8x8xf32>, vector<2x8x8xf32>, vector<2x8x8xf32> -> vector<2x8x8xf32>
    "tpu.trace_stop"() : () -> ()
    %c0_23 = arith.constant 0 : index
    %c0_24 = arith.constant 0 : index
    %c16 = arith.constant 16 : index
    %66 = vector.load %arg5[%c0_23, %c0_24, %c16] : memref<2x8x32xf32, #tpu.memory_space<vmem>>, vector<2x8x8xf32>
    tpu.vector_store %arg5[%c0_23, %c0_24, %c16], %65 {strides = array<i32>} : memref<2x8x32xf32, #tpu.memory_space<vmem>>, vector<2x8x8xf32>,
    %67 = vector.extract_strided_slice %7 {offsets = [0, 24], sizes = [16, 8], strides = [1, 1]} : vector<16x32xf32> to vector<16x8xf32>
    %68 = vector.shape_cast %67 : vector<16x8xf32> to vector<2x8x8xf32>
    %69 = vector.extract_strided_slice %8 {offsets = [0, 24], sizes = [16, 8], strides = [1, 1]} : vector<16x32xf32> to vector<16x8xf32>
    %70 = vector.shape_cast %69 : vector<16x8xf32> to vector<2x8x8xf32>
    %71 = vector.extract_strided_slice %9 {offsets = [0, 24], sizes = [16, 8], strides = [1, 1]} : vector<16x32xf32> to vector<16x8xf32>
    %72 = vector.shape_cast %71 : vector<16x8xf32> to vector<2x8x8xf32>
    "tpu.trace_start"() <{level = 10 : i32, message = "bqd,bkd->bqk"}> : () -> ()
    %cst_25 = arith.constant dense<0.000000e+00> : vector<2x8x8xf32>
    %73 = tpu.matmul %68, %70, %cst_25 {dimension_numbers = #tpu.dot_dimension_numbers<[2], [2], [1], [1], [0, 0, 0, 1, 1, 1], [0], [0]>} : vector<2x8x8xf32>, vector<2x8x8xf32>, vector<2x8x8xf32> -> vector<2x8x8xf32>
    "tpu.trace_stop"() : () -> ()
    %cst_26 = arith.constant dense<0xFF800000> : vector<2x8xf32>
    %74 = vector.multi_reduction <maximumf>, %73, %cst_26 [2] : vector<2x8x8xf32> to vector<2x8xf32>
    %75 = vector.shape_cast %74 : vector<2x8xf32> to vector<2x8x1xf32>
    %76 = vector.broadcast %75 : vector<2x8x1xf32> to vector<2x8x8xf32>
    %77 = arith.subf %73, %76 : vector<2x8x8xf32>
    %78 = math.exp %77 : vector<2x8x8xf32>
    %cst_27 = arith.constant dense<0.000000e+00> : vector<2x8xf32>
    %79 = vector.multi_reduction <add>, %78, %cst_27 [2] : vector<2x8x8xf32> to vector<2x8xf32>
    %80 = vector.shape_cast %79 : vector<2x8xf32> to vector<2x8x1xf32>
    %81 = tpu.reciprocal %80 : vector<2x8x1xf32> -> vector<2x8x1xf32>
    %82 = vector.broadcast %81 : vector<2x8x1xf32> to vector<2x8x8xf32>
    %83 = arith.mulf %78, %82 : vector<2x8x8xf32>
    "tpu.trace_start"() <{level = 10 : i32, message = "bqk,bkd->bqd"}> : () -> ()
    %cst_28 = arith.constant dense<0.000000e+00> : vector<2x8x8xf32>
    %84 = tpu.matmul %83, %72, %cst_28 {dimension_numbers = #tpu.dot_dimension_numbers<[2], [1], [1], [2], [0, 0, 0, 1, 1, 2], [0], [0]>} : vector<2x8x8xf32>, vector<2x8x8xf32>, vector<2x8x8xf32> -> vector<2x8x8xf32>
    "tpu.trace_stop"() : () -> ()
    %c0_29 = arith.constant 0 : index
    %c0_30 = arith.constant 0 : index
    %c24 = arith.constant 24 : index
    %85 = vector.load %arg5[%c0_29, %c0_30, %c24] : memref<2x8x32xf32, #tpu.memory_space<vmem>>, vector<2x8x8xf32>
    tpu.vector_store %arg5[%c0_29, %c0_30, %c24], %84 {strides = array<i32>} : memref<2x8x32xf32, #tpu.memory_space<vmem>>, vector<2x8x8xf32>,
    %c0_31 = arith.constant 0 : index
    %c0_32 = arith.constant 0 : index
    %c0_33 = arith.constant 0 : index
    %86 = vector.load %arg5[%c0_31, %c0_32, %c0_33] : memref<2x8x32xf32, #tpu.memory_space<vmem>>, vector<2x8x32xf32>
    %c0_34 = arith.constant 0 : index
    %c0_35 = arith.constant 0 : index
    %c0_36 = arith.constant 0 : index
    %87 = vector.load %arg4[%c0_34, %c0_35, %c0_36] : memref<2x8x32xf32, #tpu.memory_space<vmem>>, vector<2x8x32xf32>
    tpu.vector_store %arg4[%c0_34, %c0_35, %c0_36], %86 {strides = array<i32>} : memref<2x8x32xf32, #tpu.memory_space<vmem>>, vector<2x8x32xf32>,
    return
  }
  func.func @transform_0(%arg0: i32) -> (i32, i32, i32) {
    %c0_i32 = arith.constant 0 : i32
    %c0_i32_0 = arith.constant 0 : i32
    %c0_i32_1 = arith.constant 0 : i32
    return %arg0, %c0_i32, %c0_i32_0 : i32, i32, i32
  }
  func.func @transform_1(%arg0: i32) -> (i32, i32) {
    %c0_i32 = arith.constant 0 : i32
    %c0_i32_0 = arith.constant 0 : i32
    %c0_i32_1 = arith.constant 0 : i32
    return %c0_i32, %c0_i32_0 : i32, i32
  }
  func.func @transform_2(%arg0: i32) -> (i32, i32) {
    %c0_i32 = arith.constant 0 : i32
    %c0_i32_0 = arith.constant 0 : i32
    %c0_i32_1 = arith.constant 0 : i32
    return %c0_i32, %c0_i32_0 : i32, i32
  }
  func.func @transform_3(%arg0: i32) -> (i32, i32, i32) {
    %c0_i32 = arith.constant 0 : i32
    %c0_i32_0 = arith.constant 0 : i32
    %c0_i32_1 = arith.constant 0 : i32
    return %arg0, %c0_i32, %c0_i32_0 : i32, i32, i32
  }
}

</mosaic_0001>

<llo_original>
// kernel: tpu_custom_call.1
$region0: #{tpu_custom_call.1}
  #allocation0 [shape = 'u32[]', space=smem, size = 0x4, offset = 0x4, fixed_abs, tag = 'smem constant byte address 0x4 - core index']
  #allocation1 [shape = 'u32[144,128]{1,0:T(1,128)}', space=vmem, size = 0x12000, scoped, tag = 'internal scratch']
  #allocation2 [shape = 'f32[2,8,32]{2,1,0:T(8,128)}', space=vmem, size = 0x2000, scoped, tag = 'scratch operand']
  %s0 = inlined_call_operand.hbm [shape: f32[2,8,32], index: 0, kind: input, shape index: {}]
  %s1 = inlined_call_operand.hbm [shape: f32[32,96], index: 1, kind: input, shape index: {}]
  %s2 = inlined_call_operand.hbm [shape: f32[1,96], index: 2, kind: input, shape index: {}]
  %s3 = inlined_call_operand.hbm [shape: f32[2,8,32], index: 3, kind: output, shape index: {}]
  %s4 = sld [smem:[#allocation0]]
  $region34: #{tpu_custom_call.1} parent=0
    _
  %s6 = ssub.s32 1, %s4
  %s7 = scalar_select 0, %s6, %s4
  $region1: #{tpu_custom_call.1} parent=0
    #allocation3 [shape = 'u8[8192]{0}', space=vmem, size = 0x2000, scoped, tag = 'input window, operand 0, single buffered']
    #allocation4 [shape = 's32[1]{0}', space=sflag, size = 0x4, scoped, tag = 'scoped memory for tpu_custom_call.1']
    #allocation5 [shape = 's32[1]{0}', space=sflag, size = 0x4, scoped, tag = 'scoped memory for tpu_custom_call.1']
    #allocation6 [shape = 'u8[16384]{0}', space=vmem, size = 0x4000, scoped, tag = 'input window, operand 1, single buffered']
    #allocation7 [shape = 's32[1]{0}', space=sflag, size = 0x4, scoped, tag = 'scoped memory for tpu_custom_call.1']
    #allocation8 [shape = 'u8[512]{0}', space=vmem, size = 0x400, scoped, tag = 'input window, operand 2, single buffered']
    #allocation9 [shape = 'u8[8192]{0}', space=vmem, size = 0x2000, scoped, tag = 'output window, operand 0, single buffered']
    %8 = vsyncpa [#allocation4], 0
    %9 = vsyncpa [#allocation7], 0
    %10 = vsyncpa [#allocation5], 0
    // Predicated region
    $region2: #{tpu_custom_call.1} parent=1 // pred_check
      _
    $region3: #{tpu_custom_call.1} parent=1 // pred_check_branch
      %12 = sbr.rel (0) target = $region5
    $region4: #{tpu_custom_call.1} parent=1 // pred_region
      %s14 = ssub.s32 256, 256
      %15 = vsyncadd [#allocation4], %s14
      %s16 = sshll.u32 [#allocation3], 4
      %s17 = int_to_ptr.vmem [resolvable:$true] %s16
      %22 = dma.hbm_to_vmem [thread:$0]  %s0, 256, %s17, [#allocation4], 128, 128, 8
    $region5: #{tpu_custom_call.1} parent=1 // pred_fallthru
      _
    // Predicated region
    $region6: #{tpu_custom_call.1} parent=1 // pred_check
      _
    $region7: #{tpu_custom_call.1} parent=1 // pred_check_branch
      %24 = sbr.rel (0) target = $region9
    $region8: #{tpu_custom_call.1} parent=1 // pred_region
      %s26 = ssub.s32 512, 512
      %27 = vsyncadd [#allocation7], %s26
      %s28 = sshll.u32 [#allocation6], 4
      %s29 = int_to_ptr.vmem [resolvable:$true] %s28
      %34 = dma.hbm_to_vmem [thread:$0]  %s1, 512, %s29, [#allocation7], 128, 128, 8
    $region9: #{tpu_custom_call.1} parent=1 // pred_fallthru
      _
    // Predicated region
    $region10: #{tpu_custom_call.1} parent=1 // pred_check
      _
    $region11: #{tpu_custom_call.1} parent=1 // pred_check_branch
      %36 = sbr.rel (0) target = $region13
    $region12: #{tpu_custom_call.1} parent=1 // pred_region
      %s38 = ssub.s32 16, 16
      %39 = vsyncadd [#allocation7], %s38
      %s41 = sshll.u32 [#allocation8], 4
      %s42 = int_to_ptr.vmem [resolvable:$true] %s41
      %44 = dma.hbm_to_vmem [thread:$0]  %s2, 16, %s42, [#allocation7]
    $region13: #{tpu_custom_call.1} parent=1 // pred_fallthru
      _
    // Predicated region
    $region14: #{tpu_custom_call.1} parent=1 // pred_check
      _
    $region15: #{tpu_custom_call.1} parent=1 // pred_check_branch
      %46 = sbr.rel (0) target = $region17
    $region16: #{tpu_custom_call.1} parent=1 // pred_region
      %47 = dma.done [#allocation4], 256
    $region17: #{tpu_custom_call.1} parent=1 // pred_fallthru
      _
    // Predicated region
    $region18: #{tpu_custom_call.1} parent=1 // pred_check
      _
    $region19: #{tpu_custom_call.1} parent=1 // pred_check_branch
      %49 = sbr.rel (0) target = $region21
    $region20: #{tpu_custom_call.1} parent=1 // pred_region
      %50 = dma.done [#allocation7], 512
    $region21: #{tpu_custom_call.1} parent=1 // pred_fallthru
      _
    // Predicated region
    $region22: #{tpu_custom_call.1} parent=1 // pred_check
      _
    $region23: #{tpu_custom_call.1} parent=1 // pred_check_branch
      %52 = sbr.rel (0) target = $region25
    $region24: #{tpu_custom_call.1} parent=1 // pred_region
      %53 = dma.done [#allocation7], 16
    $region25: #{tpu_custom_call.1} parent=1 // pred_fallthru
      _
    %v54 = vld [vmem:[#allocation3] sm:$0xff]
    %v55 = vld [vmem:[#allocation3 + $0x8] sm:$0xff]
    %v56 = vld [vmem:[#allocation6] sm:$0xff]
    %v57 = vld [vmem:[#allocation6 + $0x8] sm:$0xff]
    %v58 = vld [vmem:[#allocation6 + $0x10] sm:$0xff]
    %v59 = vld [vmem:[#allocation6 + $0x18] sm:$0xff]
    %v60 = vld [vmem:[#allocation8] sm:$0x1]
    %v62 = vlaneseq
    %v63 = vshrl.u32 %v62, 7
    %v64 = vsub.s32 0, %v63
    %v65 = vrot.slane %v60, %v64
    %vm67 = vcmask 261120
    %v69 = vsel %vm67, %v54, 0
    %v72 = vsel %vm67, %v55, 0
    %74 = vmatprep.subr.mxu0 0.0
    %75 = vmatpush1.msra.mxu0 %v56
    %76 = vmatprep.subr.mxu0 0.0
    %77 = vmatpush1.msra.mxu0 %v57
    %78 = vmatprep.subr.mxu0 0.0
    %79 = vmatpush1.msra.mxu0 %v58
    %80 = vmatprep.subr.mxu0 0.0
    %81 = vmatpush1.msra.mxu0 %v59
    %82 = vmatprep.subr.mxu0 0.0
    %83 = vmatpush1.msra.mxu0 0.0
    %84 = vmatprep.subr.mxu0 0.0
    %85 = vmatpush1.msra.mxu0 0.0
    %86 = vmatprep.subr.mxu0 0.0
    %87 = vmatpush1.msra.mxu0 0.0
    %88 = vmatprep.subr.mxu0 0.0
    %89 = vmatpush1.msra.mxu0 0.0
    %90 = vmatprep.subr.mxu0 0.0
    %91 = vmatpush1.msra.mxu0 0.0
    %92 = vmatprep.subr.mxu0 0.0
    %93 = vmatpush1.msra.mxu0 0.0
    %94 = vmatprep.subr.mxu0 0.0
    %95 = vmatpush1.msra.mxu0 0.0
    %96 = vmatprep.subr.mxu0 0.0
    %97 = vmatpush1.msra.mxu0 0.0
    %98 = vmatprep.subr.mxu0 0.0
    %99 = vmatpush1.msra.mxu0 0.0
    %100 = vmatprep.subr.mxu0 0.0
    %101 = vmatpush1.msra.mxu0 0.0
    %102 = vmatprep.subr.mxu0 0.0
    %103 = vmatpush1.msra.mxu0 0.0
    %104 = vmatprep.subr.mxu0 0.0
    %105 = vmatpush1.msra.mxu0 0.0
    %106 = vmatprep.subr.mxu0 0.0
    %107 = vmatpush1.msra.mxu0 0.0
    %108 = vmatprep.subr.mxu0 0.0
    %109 = vmatpush1.msra.mxu0 0.0
    %110 = vmatprep.subr.mxu0 0.0
    %111 = vmatpush1.msra.mxu0 0.0
    %112 = vmatprep.subr.mxu0 0.0
    %113 = vmatpush1.msra.mxu0 0.0
    %114 = vmatprep.subr.mxu0 0.0
    %115 = vmatpush1.msra.mxu0 0.0
    %116 = vmatprep.subr.mxu0 0.0
    %117 = vmatpush1.msra.mxu0 0.0
    %118 = vmatprep.subr.mxu0 0.0
    %119 = vmatpush1.msra.mxu0 0.0
    %120 = vmatprep.subr.mxu0 0.0
    %121 = vmatpush1.msra.mxu0 0.0
    %122 = vmatprep.subr.mxu0 0.0
    %123 = vmatpush1.msra.mxu0 0.0
    %124 = vmatprep.subr.mxu0 0.0
    %125 = vmatpush1.msra.mxu0 0.0
    %126 = vmatprep.subr.mxu0 0.0
    %127 = vmatpush1.msra.mxu0 0.0
    %128 = vmatprep.subr.mxu0 0.0
    %129 = vmatpush1.msra.mxu0 0.0
    %130 = vmatprep.subr.mxu0 0.0
    %131 = vmatpush1.msra.mxu0 0.0
    %132 = vmatprep.subr.mxu0 0.0
    %133 = vmatpush1.msra.mxu0 0.0
    %134 = vmatprep.subr.mxu0 0.0
    %135 = vmatpush1.msra.mxu0 0.0
    %136 = vmatprep.subr.mxu0 0.0
    %137 = vmatpush1.msra.mxu0 0.0
    %138 = vmatprep.mubr.f32.mxu0 0.0
    %139 = vmatmul.mubr.f32.gmra.mrb[0].mxu0 %v69
    %v140 = vpop.f32.mrb[0].mxu0
    %v141 = vadd.f32 %v65, %v140
    %v142 = vpop.f32.mrb[0].mxu0
    %143 = vmatprep.mubr.f32.mxu0 0.0
    %144 = vmatmul.mubr.f32.gmra.mrb[0].mxu0 %v72
    %v145 = vpop.f32.mrb[0].mxu0
    %v146 = vadd.f32 %v65, %v145
    %v147 = vpop.f32.mrb[0].mxu0
    %148 = vdwg.mxu0
    %150 = vrot.lane.b32.xlu0 %v141, 96
    %v151 = vpop.permute.xlu0 %150
    %vm152 = vcmask 64512
    %v153 = vsel %vm152, %v141, 0
    %v155 = vsel %vm152, %v151, 0
    %157 = vmatprep.subr.mxu0 0.0
    %158 = vmatpush1.xpose.msra.mxu0 %v155
    %159 = vmatprep.subr.mxu0 0.0
    %160 = vmatpush1.xpose.msra.mxu0 0.0
    %161 = vmatprep.subr.mxu0 0.0
    %162 = vmatpush1.xpose.msra.mxu0 0.0
    %163 = vmatprep.subr.mxu0 0.0
    %164 = vmatpush1.xpose.msra.mxu0 0.0
    %165 = vmatprep.subr.mxu0 0.0
    %166 = vmatpush1.xpose.msra.mxu0 0.0
    %167 = vmatprep.subr.mxu0 0.0
    %168 = vmatpush1.xpose.msra.mxu0 0.0
    %169 = vmatprep.subr.mxu0 0.0
    %170 = vmatpush1.xpose.msra.mxu0 0.0
    %171 = vmatprep.subr.mxu0 0.0
    %172 = vmatpush1.xpose.msra.mxu0 0.0
    %173 = vmatprep.subr.mxu0 0.0
    %174 = vmatpush1.xpose.msra.mxu0 0.0
    %175 = vmatprep.subr.mxu0 0.0
    %176 = vmatpush1.xpose.msra.mxu0 0.0
    %177 = vmatprep.subr.mxu0 0.0
    %178 = vmatpush1.xpose.msra.mxu0 0.0
    %179 = vmatprep.subr.mxu0 0.0
    %180 = vmatpush1.xpose.msra.mxu0 0.0
    %181 = vmatprep.subr.mxu0 0.0
    %182 = vmatpush1.xpose.msra.mxu0 0.0
    %183 = vmatprep.subr.mxu0 0.0
    %184 = vmatpush1.xpose.msra.mxu0 0.0
    %185 = vmatprep.subr.mxu0 0.0
    %186 = vmatpush1.xpose.msra.mxu0 0.0
    %187 = vmatprep.subr.mxu0 0.0
    %188 = vmatpush1.xpose.msra.mxu0 0.0
    %189 = vmatprep.subr.mxu0 0.0
    %190 = vmatpush1.xpose.msra.mxu0 0.0
    %191 = vmatprep.subr.mxu0 0.0
    %192 = vmatpush1.xpose.msra.mxu0 0.0
    %193 = vmatprep.subr.mxu0 0.0
    %194 = vmatpush1.xpose.msra.mxu0 0.0
    %195 = vmatprep.subr.mxu0 0.0
    %196 = vmatpush1.xpose.msra.mxu0 0.0
    %197 = vmatprep.subr.mxu0 0.0
    %198 = vmatpush1.xpose.msra.mxu0 0.0
    %199 = vmatprep.subr.mxu0 0.0
    %200 = vmatpush1.xpose.msra.mxu0 0.0
    %201 = vmatprep.subr.mxu0 0.0
    %202 = vmatpush1.xpose.msra.mxu0 0.0
    %203 = vmatprep.subr.mxu0 0.0
    %204 = vmatpush1.xpose.msra.mxu0 0.0
    %205 = vmatprep.subr.mxu0 0.0
    %206 = vmatpush1.xpose.msra.mxu0 0.0
    %207 = vmatprep.subr.mxu0 0.0
    %208 = vmatpush1.xpose.msra.mxu0 0.0
    %209 = vmatprep.subr.mxu0 0.0
    %210 = vmatpush1.xpose.msra.mxu0 0.0
    %211 = vmatprep.subr.mxu0 0.0
    %212 = vmatpush1.xpose.msra.mxu0 0.0
    %213 = vmatprep.subr.mxu0 0.0
    %214 = vmatpush1.xpose.msra.mxu0 0.0
    %215 = vmatprep.subr.mxu0 0.0
    %216 = vmatpush1.xpose.msra.mxu0 0.0
    %217 = vmatprep.subr.mxu0 0.0
    %218 = vmatpush1.xpose.msra.mxu0 0.0
    %219 = vmatprep.subr.mxu0 0.0
    %220 = vmatpush1.xpose.msra.mxu0 0.0
    %221 = vmatprep.mubr.f32.mxu0 0.0
    %222 = vmatmul.mubr.f32.gmra.mrb[0].mxu0 %v153
    %v223 = vpop.f32.mrb[0].mxu0
    %v224 = vadd.f32 0.0, %v223
    %v225 = vpop.f32.mrb[0].mxu0
    %226 = vdwg.mxu0
    %228 = vrot.lane.b32.xlu0 %v146, 96
    %v229 = vpop.permute.xlu0 %228
    %v230 = vsel %vm152, %v146, 0
    %v232 = vsel %vm152, %v229, 0
    %234 = vmatprep.subr.mxu0 0.0
    %235 = vmatpush1.xpose.msra.mxu0 %v232
    %236 = vmatprep.subr.mxu0 0.0
    %237 = vmatpush1.xpose.msra.mxu0 0.0
    %238 = vmatprep.subr.mxu0 0.0
    %239 = vmatpush1.xpose.msra.mxu0 0.0
    %240 = vmatprep.subr.mxu0 0.0
    %241 = vmatpush1.xpose.msra.mxu0 0.0
    %242 = vmatprep.subr.mxu0 0.0
    %243 = vmatpush1.xpose.msra.mxu0 0.0
    %244 = vmatprep.subr.mxu0 0.0
    %245 = vmatpush1.xpose.msra.mxu0 0.0
    %246 = vmatprep.subr.mxu0 0.0
    %247 = vmatpush1.xpose.msra.mxu0 0.0
    %248 = vmatprep.subr.mxu0 0.0
    %249 = vmatpush1.xpose.msra.mxu0 0.0
    %250 = vmatprep.subr.mxu0 0.0
    %251 = vmatpush1.xpose.msra.mxu0 0.0
    %252 = vmatprep.subr.mxu0 0.0
    %253 = vmatpush1.xpose.msra.mxu0 0.0
    %254 = vmatprep.subr.mxu0 0.0
    %255 = vmatpush1.xpose.msra.mxu0 0.0
    %256 = vmatprep.subr.mxu0 0.0
    %257 = vmatpush1.xpose.msra.mxu0 0.0
    %258 = vmatprep.subr.mxu0 0.0
    %259 = vmatpush1.xpose.msra.mxu0 0.0
    %260 = vmatprep.subr.mxu0 0.0
    %261 = vmatpush1.xpose.msra.mxu0 0.0
    %262 = vmatprep.subr.mxu0 0.0
    %263 = vmatpush1.xpose.msra.mxu0 0.0
    %264 = vmatprep.subr.mxu0 0.0
    %265 = vmatpush1.xpose.msra.mxu0 0.0
    %266 = vmatprep.subr.mxu0 0.0
    %267 = vmatpush1.xpose.msra.mxu0 0.0
    %268 = vmatprep.subr.mxu0 0.0
    %269 = vmatpush1.xpose.msra.mxu0 0.0
    %270 = vmatprep.subr.mxu0 0.0
    %271 = vmatpush1.xpose.msra.mxu0 0.0
    %272 = vmatprep.subr.mxu0 0.0
    %273 = vmatpush1.xpose.msra.mxu0 0.0
    %274 = vmatprep.subr.mxu0 0.0
    %275 = vmatpush1.xpose.msra.mxu0 0.0
    %276 = vmatprep.subr.mxu0 0.0
    %277 = vmatpush1.xpose.msra.mxu0 0.0
    %278 = vmatprep.subr.mxu0 0.0
    %279 = vmatpush1.xpose.msra.mxu0 0.0
    %280 = vmatprep.subr.mxu0 0.0
    %281 = vmatpush1.xpose.msra.mxu0 0.0
    %282 = vmatprep.subr.mxu0 0.0
    %283 = vmatpush1.xpose.msra.mxu0 0.0
    %284 = vmatprep.subr.mxu0 0.0
    %285 = vmatpush1.xpose.msra.mxu0 0.0
    %286 = vmatprep.subr.mxu0 0.0
    %287 = vmatpush1.xpose.msra.mxu0 0.0
    %288 = vmatprep.subr.mxu0 0.0
    %289 = vmatpush1.xpose.msra.mxu0 0.0
    %290 = vmatprep.subr.mxu0 0.0
    %291 = vmatpush1.xpose.msra.mxu0 0.0
    %292 = vmatprep.subr.mxu0 0.0
    %293 = vmatpush1.xpose.msra.mxu0 0.0
    %294 = vmatprep.subr.mxu0 0.0
    %295 = vmatpush1.xpose.msra.mxu0 0.0
    %296 = vmatprep.subr.mxu0 0.0
    %297 = vmatpush1.xpose.msra.mxu0 0.0
    %298 = vmatprep.mubr.f32.mxu0 0.0
    %299 = vmatmul.mubr.f32.gmra.mrb[0].mxu0 %v230
    %v300 = vpop.f32.mrb[0].mxu0
    %v301 = vadd.f32 0.0, %v300
    %v302 = vpop.f32.mrb[0].mxu0
    %303 = vdwg.mxu0
    %v304 = vsel %vm152, %v224, -inf
    %305 = vmax.xlane.f32.xlu0 %v304
    %v306 = vpop.xlane.xlu0 %305
    %v307 = vsel %vm152, %v301, -inf
    %308 = vmax.xlane.f32.xlu0 %v307
    %v309 = vpop.xlane.xlu0 %308
    %v310 = vsub.f32 %v224, %v306
    %v311 = vsub.f32 %v301, %v309
    %v312 = vmul.f32 %v310, 1.442695
    %v313 = vpow.pop %v312
    %v314 = vmul.f32 %v311, 1.442695
    %v315 = vpow.pop %v314
    %v316 = vsel %vm152, %v313, 0.0
    %317 = vadd.xlane.f32.xlu0 %v316
    %v318 = vpop.xlane.xlu0 %317
    %v319 = vsel %vm152, %v315, 0.0
    %320 = vadd.xlane.f32.xlu0 %v319
    %v321 = vpop.xlane.xlu0 %320
    %v322 = vrcp.pop %v318
    %v323 = vrcp.pop %v321
    %v324 = vmul.f32 %v313, %v322
    %v325 = vmul.f32 %v315, %v323
    %326 = vrot.lane.b32.xlu0 %v141, 64
    %v327 = vpop.permute.xlu0 %326
    %v330 = vsel %vm152, %v324, 0
    %332 = vmatprep.subr.mxu0 0.0
    %333 = vmatpush1.msra.mxu0 %v327
    %334 = vmatprep.subr.mxu0 0.0
    %335 = vmatpush1.msra.mxu0 0.0
    %336 = vmatprep.subr.mxu0 0.0
    %337 = vmatpush1.msra.mxu0 0.0
    %338 = vmatprep.subr.mxu0 0.0
    %339 = vmatpush1.msra.mxu0 0.0
    %340 = vmatprep.subr.mxu0 0.0
    %341 = vmatpush1.msra.mxu0 0.0
    %342 = vmatprep.subr.mxu0 0.0
    %343 = vmatpush1.msra.mxu0 0.0
    %344 = vmatprep.subr.mxu0 0.0
    %345 = vmatpush1.msra.mxu0 0.0
    %346 = vmatprep.subr.mxu0 0.0
    %347 = vmatpush1.msra.mxu0 0.0
    %348 = vmatprep.subr.mxu0 0.0
    %349 = vmatpush1.msra.mxu0 0.0
    %350 = vmatprep.subr.mxu0 0.0
    %351 = vmatpush1.msra.mxu0 0.0
    %352 = vmatprep.subr.mxu0 0.0
    %353 = vmatpush1.msra.mxu0 0.0
    %354 = vmatprep.subr.mxu0 0.0
    %355 = vmatpush1.msra.mxu0 0.0
    %356 = vmatprep.subr.mxu0 0.0
    %357 = vmatpush1.msra.mxu0 0.0
    %358 = vmatprep.subr.mxu0 0.0
    %359 = vmatpush1.msra.mxu0 0.0
    %360 = vmatprep.subr.mxu0 0.0
    %361 = vmatpush1.msra.mxu0 0.0
    %362 = vmatprep.subr.mxu0 0.0
    %363 = vmatpush1.msra.mxu0 0.0
    %364 = vmatprep.subr.mxu0 0.0
    %365 = vmatpush1.msra.mxu0 0.0
    %366 = vmatprep.subr.mxu0 0.0
    %367 = vmatpush1.msra.mxu0 0.0
    %368 = vmatprep.subr.mxu0 0.0
    %369 = vmatpush1.msra.mxu0 0.0
    %370 = vmatprep.subr.mxu0 0.0
    %371 = vmatpush1.msra.mxu0 0.0
    %372 = vmatprep.subr.mxu0 0.0
    %373 = vmatpush1.msra.mxu0 0.0
    %374 = vmatprep.subr.mxu0 0.0
    %375 = vmatpush1.msra.mxu0 0.0
    %376 = vmatprep.subr.mxu0 0.0
    %377 = vmatpush1.msra.mxu0 0.0
    %378 = vmatprep.subr.mxu0 0.0
    %379 = vmatpush1.msra.mxu0 0.0
    %380 = vmatprep.subr.mxu0 0.0
    %381 = vmatpush1.msra.mxu0 0.0
    %382 = vmatprep.subr.mxu0 0.0
    %383 = vmatpush1.msra.mxu0 0.0
    %384 = vmatprep.subr.mxu0 0.0
    %385 = vmatpush1.msra.mxu0 0.0
    %386 = vmatprep.subr.mxu0 0.0
    %387 = vmatpush1.msra.mxu0 0.0
    %388 = vmatprep.subr.mxu0 0.0
    %389 = vmatpush1.msra.mxu0 0.0
    %390 = vmatprep.subr.mxu0 0.0
    %391 = vmatpush1.msra.mxu0 0.0
    %392 = vmatprep.subr.mxu0 0.0
    %393 = vmatpush1.msra.mxu0 0.0
    %394 = vmatprep.subr.mxu0 0.0
    %395 = vmatpush1.msra.mxu0 0.0
    %396 = vmatprep.mubr.f32.mxu0 0.0
    %397 = vmatmul.mubr.f32.gmra.mrb[0].mxu0 %v330
    %v398 = vpop.f32.mrb[0].mxu0
    %v399 = vadd.f32 0.0, %v398
    %v400 = vpop.f32.mrb[0].mxu0
    %401 = vdwg.mxu0
    %402 = vrot.lane.b32.xlu0 %v146, 64
    %v403 = vpop.permute.xlu0 %402
    %v406 = vsel %vm152, %v325, 0
    %408 = vmatprep.subr.mxu0 0.0
    %409 = vmatpush1.msra.mxu0 %v403
    %410 = vmatprep.subr.mxu0 0.0
    %411 = vmatpush1.msra.mxu0 0.0
    %412 = vmatprep.subr.mxu0 0.0
    %413 = vmatpush1.msra.mxu0 0.0
    %414 = vmatprep.subr.mxu0 0.0
    %415 = vmatpush1.msra.mxu0 0.0
    %416 = vmatprep.subr.mxu0 0.0
    %417 = vmatpush1.msra.mxu0 0.0
    %418 = vmatprep.subr.mxu0 0.0
    %419 = vmatpush1.msra.mxu0 0.0
    %420 = vmatprep.subr.mxu0 0.0
    %421 = vmatpush1.msra.mxu0 0.0
    %422 = vmatprep.subr.mxu0 0.0
    %423 = vmatpush1.msra.mxu0 0.0
    %424 = vmatprep.subr.mxu0 0.0
    %425 = vmatpush1.msra.mxu0 0.0
    %426 = vmatprep.subr.mxu0 0.0
    %427 = vmatpush1.msra.mxu0 0.0
    %428 = vmatprep.subr.mxu0 0.0
    %429 = vmatpush1.msra.mxu0 0.0
    %430 = vmatprep.subr.mxu0 0.0
    %431 = vmatpush1.msra.mxu0 0.0
    %432 = vmatprep.subr.mxu0 0.0
    %433 = vmatpush1.msra.mxu0 0.0
    %434 = vmatprep.subr.mxu0 0.0
    %435 = vmatpush1.msra.mxu0 0.0
    %436 = vmatprep.subr.mxu0 0.0
    %437 = vmatpush1.msra.mxu0 0.0
    %438 = vmatprep.subr.mxu0 0.0
    %439 = vmatpush1.msra.mxu0 0.0
    %440 = vmatprep.subr.mxu0 0.0
    %441 = vmatpush1.msra.mxu0 0.0
    %442 = vmatprep.subr.mxu0 0.0
    %443 = vmatpush1.msra.mxu0 0.0
    %444 = vmatprep.subr.mxu0 0.0
    %445 = vmatpush1.msra.mxu0 0.0
    %446 = vmatprep.subr.mxu0 0.0
    %447 = vmatpush1.msra.mxu0 0.0
    %448 = vmatprep.subr.mxu0 0.0
    %449 = vmatpush1.msra.mxu0 0.0
    %450 = vmatprep.subr.mxu0 0.0
    %451 = vmatpush1.msra.mxu0 0.0
    %452 = vmatprep.subr.mxu0 0.0
    %453 = vmatpush1.msra.mxu0 0.0
    %454 = vmatprep.subr.mxu0 0.0
    %455 = vmatpush1.msra.mxu0 0.0
    %456 = vmatprep.subr.mxu0 0.0
    %457 = vmatpush1.msra.mxu0 0.0
    %458 = vmatprep.subr.mxu0 0.0
    %459 = vmatpush1.msra.mxu0 0.0
    %460 = vmatprep.subr.mxu0 0.0
    %461 = vmatpush1.msra.mxu0 0.0
    %462 = vmatprep.subr.mxu0 0.0
    %463 = vmatpush1.msra.mxu0 0.0
    %464 = vmatprep.subr.mxu0 0.0
    %465 = vmatpush1.msra.mxu0 0.0
    %466 = vmatprep.subr.mxu0 0.0
    %467 = vmatpush1.msra.mxu0 0.0
    %468 = vmatprep.subr.mxu0 0.0
    %469 = vmatpush1.msra.mxu0 0.0
    %470 = vmatprep.subr.mxu0 0.0
    %471 = vmatpush1.msra.mxu0 0.0
    %472 = vmatprep.mubr.f32.mxu0 0.0
    %473 = vmatmul.mubr.f32.gmra.mrb[0].mxu0 %v406
    %v474 = vpop.f32.mrb[0].mxu0
    %v475 = vadd.f32 0.0, %v474
    %v476 = vpop.f32.mrb[0].mxu0
    %477 = vdwg.mxu0
    %478 = vst.msk [vmem:[#allocation2] sm:$0xff] %vm152, %v399
    %479 = vst.msk [vmem:[#allocation2 + $0x8] sm:$0xff] %vm152, %v475
    %480 = vrot.lane.b32.xlu0 %v141, 120
    %v481 = vpop.permute.xlu0 %480
    %482 = vrot.lane.b32.xlu0 %v141, 88
    %v483 = vpop.permute.xlu0 %482
    %v484 = vsel %vm152, %v481, 0
    %v486 = vsel %vm152, %v483, 0
    %488 = vmatprep.subr.mxu0 0.0
    %489 = vmatpush1.xpose.msra.mxu0 %v486
    %490 = vmatprep.subr.mxu0 0.0
    %491 = vmatpush1.xpose.msra.mxu0 0.0
    %492 = vmatprep.subr.mxu0 0.0
    %493 = vmatpush1.xpose.msra.mxu0 0.0
    %494 = vmatprep.subr.mxu0 0.0
    %495 = vmatpush1.xpose.msra.mxu0 0.0
    %496 = vmatprep.subr.mxu0 0.0
    %497 = vmatpush1.xpose.msra.mxu0 0.0
    %498 = vmatprep.subr.mxu0 0.0
    %499 = vmatpush1.xpose.msra.mxu0 0.0
    %500 = vmatprep.subr.mxu0 0.0
    %501 = vmatpush1.xpose.msra.mxu0 0.0
    %502 = vmatprep.subr.mxu0 0.0
    %503 = vmatpush1.xpose.msra.mxu0 0.0
    %504 = vmatprep.subr.mxu0 0.0
    %505 = vmatpush1.xpose.msra.mxu0 0.0
    %506 = vmatprep.subr.mxu0 0.0
    %507 = vmatpush1.xpose.msra.mxu0 0.0
    %508 = vmatprep.subr.mxu0 0.0
    %509 = vmatpush1.xpose.msra.mxu0 0.0
    %510 = vmatprep.subr.mxu0 0.0
    %511 = vmatpush1.xpose.msra.mxu0 0.0
    %512 = vmatprep.subr.mxu0 0.0
    %513 = vmatpush1.xpose.msra.mxu0 0.0
    %514 = vmatprep.subr.mxu0 0.0
    %515 = vmatpush1.xpose.msra.mxu0 0.0
    %516 = vmatprep.subr.mxu0 0.0
    %517 = vmatpush1.xpose.msra.mxu0 0.0
    %518 = vmatprep.subr.mxu0 0.0
    %519 = vmatpush1.xpose.msra.mxu0 0.0
    %520 = vmatprep.subr.mxu0 0.0
    %521 = vmatpush1.xpose.msra.mxu0 0.0
    %522 = vmatprep.subr.mxu0 0.0
    %523 = vmatpush1.xpose.msra.mxu0 0.0
    %524 = vmatprep.subr.mxu0 0.0
    %525 = vmatpush1.xpose.msra.mxu0 0.0
    %526 = vmatprep.subr.mxu0 0.0
    %527 = vmatpush1.xpose.msra.mxu0 0.0
    %528 = vmatprep.subr.mxu0 0.0
    %529 = vmatpush1.xpose.msra.mxu0 0.0
    %530 = vmatprep.subr.mxu0 0.0
    %531 = vmatpush1.xpose.msra.mxu0 0.0
    %532 = vmatprep.subr.mxu0 0.0
    %533 = vmatpush1.xpose.msra.mxu0 0.0
    %534 = vmatprep.subr.mxu0 0.0
    %535 = vmatpush1.xpose.msra.mxu0 0.0
    %536 = vmatprep.subr.mxu0 0.0
    %537 = vmatpush1.xpose.msra.mxu0 0.0
    %538 = vmatprep.subr.mxu0 0.0
    %539 = vmatpush1.xpose.msra.mxu0 0.0
    %540 = vmatprep.subr.mxu0 0.0
    %541 = vmatpush1.xpose.msra.mxu0 0.0
    %542 = vmatprep.subr.mxu0 0.0
    %543 = vmatpush1.xpose.msra.mxu0 0.0
    %544 = vmatprep.subr.mxu0 0.0
    %545 = vmatpush1.xpose.msra.mxu0 0.0
    %546 = vmatprep.subr.mxu0 0.0
    %547 = vmatpush1.xpose.msra.mxu0 0.0
    %548 = vmatprep.subr.mxu0 0.0
    %549 = vmatpush1.xpose.msra.mxu0 0.0
    %550 = vmatprep.subr.mxu0 0.0
    %551 = vmatpush1.xpose.msra.mxu0 0.0
    %552 = vmatprep.mubr.f32.mxu0 0.0
    %553 = vmatmul.mubr.f32.gmra.mrb[0].mxu0 %v484
    %v554 = vpop.f32.mrb[0].mxu0
    %v555 = vadd.f32 0.0, %v554
    %v556 = vpop.f32.mrb[0].mxu0
    %557 = vdwg.mxu0
    %558 = vrot.lane.b32.xlu0 %v146, 120
    %v559 = vpop.permute.xlu0 %558
    %560 = vrot.lane.b32.xlu0 %v146, 88
    %v561 = vpop.permute.xlu0 %560
    %v562 = vsel %vm152, %v559, 0
    %v564 = vsel %vm152, %v561, 0
    %566 = vmatprep.subr.mxu0 0.0
    %567 = vmatpush1.xpose.msra.mxu0 %v564
    %568 = vmatprep.subr.mxu0 0.0
    %569 = vmatpush1.xpose.msra.mxu0 0.0
    %570 = vmatprep.subr.mxu0 0.0
    %571 = vmatpush1.xpose.msra.mxu0 0.0
    %572 = vmatprep.subr.mxu0 0.0
    %573 = vmatpush1.xpose.msra.mxu0 0.0
    %574 = vmatprep.subr.mxu0 0.0
    %575 = vmatpush1.xpose.msra.mxu0 0.0
    %576 = vmatprep.subr.mxu0 0.0
    %577 = vmatpush1.xpose.msra.mxu0 0.0
    %578 = vmatprep.subr.mxu0 0.0
    %579 = vmatpush1.xpose.msra.mxu0 0.0
    %580 = vmatprep.subr.mxu0 0.0
    %581 = vmatpush1.xpose.msra.mxu0 0.0
    %582 = vmatprep.subr.mxu0 0.0
    %583 = vmatpush1.xpose.msra.mxu0 0.0
    %584 = vmatprep.subr.mxu0 0.0
    %585 = vmatpush1.xpose.msra.mxu0 0.0
    %586 = vmatprep.subr.mxu0 0.0
    %587 = vmatpush1.xpose.msra.mxu0 0.0
    %588 = vmatprep.subr.mxu0 0.0
    %589 = vmatpush1.xpose.msra.mxu0 0.0
    %590 = vmatprep.subr.mxu0 0.0
    %591 = vmatpush1.xpose.msra.mxu0 0.0
    %592 = vmatprep.subr.mxu0 0.0
    %593 = vmatpush1.xpose.msra.mxu0 0.0
    %594 = vmatprep.subr.mxu0 0.0
    %595 = vmatpush1.xpose.msra.mxu0 0.0
    %596 = vmatprep.subr.mxu0 0.0
    %597 = vmatpush1.xpose.msra.mxu0 0.0
    %598 = vmatprep.subr.mxu0 0.0
    %599 = vmatpush1.xpose.msra.mxu0 0.0
    %600 = vmatprep.subr.mxu0 0.0
    %601 = vmatpush1.xpose.msra.mxu0 0.0
    %602 = vmatprep.subr.mxu0 0.0
    %603 = vmatpush1.xpose.msra.mxu0 0.0
    %604 = vmatprep.subr.mxu0 0.0
    %605 = vmatpush1.xpose.msra.mxu0 0.0
    %606 = vmatprep.subr.mxu0 0.0
    %607 = vmatpush1.xpose.msra.mxu0 0.0
    %608 = vmatprep.subr.mxu0 0.0
    %609 = vmatpush1.xpose.msra.mxu0 0.0
    %610 = vmatprep.subr.mxu0 0.0
    %611 = vmatpush1.xpose.msra.mxu0 0.0
    %612 = vmatprep.subr.mxu0 0.0
    %613 = vmatpush1.xpose.msra.mxu0 0.0
    %614 = vmatprep.subr.mxu0 0.0
    %615 = vmatpush1.xpose.msra.mxu0 0.0
    %616 = vmatprep.subr.mxu0 0.0
    %617 = vmatpush1.xpose.msra.mxu0 0.0
    %618 = vmatprep.subr.mxu0 0.0
    %619 = vmatpush1.xpose.msra.mxu0 0.0
    %620 = vmatprep.subr.mxu0 0.0
    %621 = vmatpush1.xpose.msra.mxu0 0.0
    %622 = vmatprep.subr.mxu0 0.0
    %623 = vmatpush1.xpose.msra.mxu0 0.0
    %624 = vmatprep.subr.mxu0 0.0
    %625 = vmatpush1.xpose.msra.mxu0 0.0
    %626 = vmatprep.subr.mxu0 0.0
    %627 = vmatpush1.xpose.msra.mxu0 0.0
    %628 = vmatprep.subr.mxu0 0.0
    %629 = vmatpush1.xpose.msra.mxu0 0.0
    %630 = vmatprep.mubr.f32.mxu0 0.0
    %631 = vmatmul.mubr.f32.gmra.mrb[0].mxu0 %v562
    %v632 = vpop.f32.mrb[0].mxu0
    %v633 = vadd.f32 0.0, %v632
    %v634 = vpop.f32.mrb[0].mxu0
    %635 = vdwg.mxu0
    %v636 = vsel %vm152, %v555, -inf
    %637 = vmax.xlane.f32.xlu0 %v636
    %v638 = vpop.xlane.xlu0 %637
    %v639 = vsel %vm152, %v633, -inf
    %640 = vmax.xlane.f32.xlu0 %v639
    %v641 = vpop.xlane.xlu0 %640
    %v642 = vsub.f32 %v555, %v638
    %v643 = vsub.f32 %v633, %v641
    %v644 = vmul.f32 %v642, 1.442695
    %v645 = vpow.pop %v644
    %v646 = vmul.f32 %v643, 1.442695
    %v647 = vpow.pop %v646
    %v648 = vsel %vm152, %v645, 0.0
    %649 = vadd.xlane.f32.xlu0 %v648
    %v650 = vpop.xlane.xlu0 %649
    %v651 = vsel %vm152, %v647, 0.0
    %652 = vadd.xlane.f32.xlu0 %v651
    %v653 = vpop.xlane.xlu0 %652
    %v654 = vrcp.pop %v650
    %v655 = vrcp.pop %v653
    %v656 = vmul.f32 %v645, %v654
    %v657 = vmul.f32 %v647, %v655
    %658 = vrot.lane.b32.xlu0 %v141, 56
    %v659 = vpop.permute.xlu0 %658
    %v662 = vsel %vm152, %v656, 0
    %664 = vmatprep.subr.mxu0 0.0
    %665 = vmatpush1.msra.mxu0 %v659
    %666 = vmatprep.subr.mxu0 0.0
    %667 = vmatpush1.msra.mxu0 0.0
    %668 = vmatprep.subr.mxu0 0.0
    %669 = vmatpush1.msra.mxu0 0.0
    %670 = vmatprep.subr.mxu0 0.0
    %671 = vmatpush1.msra.mxu0 0.0
    %672 = vmatprep.subr.mxu0 0.0
    %673 = vmatpush1.msra.mxu0 0.0
    %674 = vmatprep.subr.mxu0 0.0
    %675 = vmatpush1.msra.mxu0 0.0
    %676 = vmatprep.subr.mxu0 0.0
    %677 = vmatpush1.msra.mxu0 0.0
    %678 = vmatprep.subr.mxu0 0.0
    %679 = vmatpush1.msra.mxu0 0.0
    %680 = vmatprep.subr.mxu0 0.0
    %681 = vmatpush1.msra.mxu0 0.0
    %682 = vmatprep.subr.mxu0 0.0
    %683 = vmatpush1.msra.mxu0 0.0
    %684 = vmatprep.subr.mxu0 0.0
    %685 = vmatpush1.msra.mxu0 0.0
    %686 = vmatprep.subr.mxu0 0.0
    %687 = vmatpush1.msra.mxu0 0.0
    %688 = vmatprep.subr.mxu0 0.0
    %689 = vmatpush1.msra.mxu0 0.0
    %690 = vmatprep.subr.mxu0 0.0
    %691 = vmatpush1.msra.mxu0 0.0
    %692 = vmatprep.subr.mxu0 0.0
    %693 = vmatpush1.msra.mxu0 0.0
    %694 = vmatprep.subr.mxu0 0.0
    %695 = vmatpush1.msra.mxu0 0.0
    %696 = vmatprep.subr.mxu0 0.0
    %697 = vmatpush1.msra.mxu0 0.0
    %698 = vmatprep.subr.mxu0 0.0
    %699 = vmatpush1.msra.mxu0 0.0
    %700 = vmatprep.subr.mxu0 0.0
    %701 = vmatpush1.msra.mxu0 0.0
    %702 = vmatprep.subr.mxu0 0.0
    %703 = vmatpush1.msra.mxu0 0.0
    %704 = vmatprep.subr.mxu0 0.0
    %705 = vmatpush1.msra.mxu0 0.0
    %706 = vmatprep.subr.mxu0 0.0
    %707 = vmatpush1.msra.mxu0 0.0
    %708 = vmatprep.subr.mxu0 0.0
    %709 = vmatpush1.msra.mxu0 0.0
    %710 = vmatprep.subr.mxu0 0.0
    %711 = vmatpush1.msra.mxu0 0.0
    %712 = vmatprep.subr.mxu0 0.0
    %713 = vmatpush1.msra.mxu0 0.0
    %714 = vmatprep.subr.mxu0 0.0
    %715 = vmatpush1.msra.mxu0 0.0
    %716 = vmatprep.subr.mxu0 0.0
    %717 = vmatpush1.msra.mxu0 0.0
    %718 = vmatprep.subr.mxu0 0.0
    %719 = vmatpush1.msra.mxu0 0.0
    %720 = vmatprep.subr.mxu0 0.0
    %721 = vmatpush1.msra.mxu0 0.0
    %722 = vmatprep.subr.mxu0 0.0
    %723 = vmatpush1.msra.mxu0 0.0
    %724 = vmatprep.subr.mxu0 0.0
    %725 = vmatpush1.msra.mxu0 0.0
    %726 = vmatprep.subr.mxu0 0.0
    %727 = vmatpush1.msra.mxu0 0.0
    %728 = vmatprep.mubr.f32.mxu0 0.0
    %729 = vmatmul.mubr.f32.gmra.mrb[0].mxu0 %v662
    %v730 = vpop.f32.mrb[0].mxu0
    %v731 = vadd.f32 0.0, %v730
    %v732 = vpop.f32.mrb[0].mxu0
    %733 = vdwg.mxu0
    %734 = vrot.lane.b32.xlu0 %v146, 56
    %v735 = vpop.permute.xlu0 %734
    %v738 = vsel %vm152, %v657, 0
    %740 = vmatprep.subr.mxu0 0.0
    %741 = vmatpush1.msra.mxu0 %v735
    %742 = vmatprep.subr.mxu0 0.0
    %743 = vmatpush1.msra.mxu0 0.0
    %744 = vmatprep.subr.mxu0 0.0
    %745 = vmatpush1.msra.mxu0 0.0
    %746 = vmatprep.subr.mxu0 0.0
    %747 = vmatpush1.msra.mxu0 0.0
    %748 = vmatprep.subr.mxu0 0.0
    %749 = vmatpush1.msra.mxu0 0.0
    %750 = vmatprep.subr.mxu0 0.0
    %751 = vmatpush1.msra.mxu0 0.0
    %752 = vmatprep.subr.mxu0 0.0
    %753 = vmatpush1.msra.mxu0 0.0
    %754 = vmatprep.subr.mxu0 0.0
    %755 = vmatpush1.msra.mxu0 0.0
    %756 = vmatprep.subr.mxu0 0.0
    %757 = vmatpush1.msra.mxu0 0.0
    %758 = vmatprep.subr.mxu0 0.0
    %759 = vmatpush1.msra.mxu0 0.0
    %760 = vmatprep.subr.mxu0 0.0
    %761 = vmatpush1.msra.mxu0 0.0
    %762 = vmatprep.subr.mxu0 0.0
    %763 = vmatpush1.msra.mxu0 0.0
    %764 = vmatprep.subr.mxu0 0.0
    %765 = vmatpush1.msra.mxu0 0.0
    %766 = vmatprep.subr.mxu0 0.0
    %767 = vmatpush1.msra.mxu0 0.0
    %768 = vmatprep.subr.mxu0 0.0
    %769 = vmatpush1.msra.mxu0 0.0
    %770 = vmatprep.subr.mxu0 0.0
    %771 = vmatpush1.msra.mxu0 0.0
    %772 = vmatprep.subr.mxu0 0.0
    %773 = vmatpush1.msra.mxu0 0.0
    %774 = vmatprep.subr.mxu0 0.0
    %775 = vmatpush1.msra.mxu0 0.0
    %776 = vmatprep.subr.mxu0 0.0
    %777 = vmatpush1.msra.mxu0 0.0
    %778 = vmatprep.subr.mxu0 0.0
    %779 = vmatpush1.msra.mxu0 0.0
    %780 = vmatprep.subr.mxu0 0.0
    %781 = vmatpush1.msra.mxu0 0.0
    %782 = vmatprep.subr.mxu0 0.0
    %783 = vmatpush1.msra.mxu0 0.0
    %784 = vmatprep.subr.mxu0 0.0
    %785 = vmatpush1.msra.mxu0 0.0
    %786 = vmatprep.subr.mxu0 0.0
    %787 = vmatpush1.msra.mxu0 0.0
    %788 = vmatprep.subr.mxu0 0.0
    %789 = vmatpush1.msra.mxu0 0.0
    %790 = vmatprep.subr.mxu0 0.0
    %791 = vmatpush1.msra.mxu0 0.0
    %792 = vmatprep.subr.mxu0 0.0
    %793 = vmatpush1.msra.mxu0 0.0
    %794 = vmatprep.subr.mxu0 0.0
    %795 = vmatpush1.msra.mxu0 0.0
    %796 = vmatprep.subr.mxu0 0.0
    %797 = vmatpush1.msra.mxu0 0.0
    %798 = vmatprep.subr.mxu0 0.0
    %799 = vmatpush1.msra.mxu0 0.0
    %800 = vmatprep.subr.mxu0 0.0
    %801 = vmatpush1.msra.mxu0 0.0
    %802 = vmatprep.subr.mxu0 0.0
    %803 = vmatpush1.msra.mxu0 0.0
    %804 = vmatprep.mubr.f32.mxu0 0.0
    %805 = vmatmul.mubr.f32.gmra.mrb[0].mxu0 %v738
    %v806 = vpop.f32.mrb[0].mxu0
    %v807 = vadd.f32 0.0, %v806
    %v808 = vpop.f32.mrb[0].mxu0
    %809 = vdwg.mxu0
    %812 = vrot.lane.b32.xlu0 %v731, 8
    %v813 = vpop.permute.xlu0 %812
    %814 = vrot.lane.b32.xlu0 %v807, 8
    %v815 = vpop.permute.xlu0 %814
    %vm818 = vcmask 130112
    %819 = vst.msk [vmem:[#allocation2] sm:$0xff] %vm818, %v813
    %820 = vst.msk [vmem:[#allocation2 + $0x8] sm:$0xff] %vm818, %v815
    %821 = vrot.lane.b32.xlu0 %v141, 112
    %v822 = vpop.permute.xlu0 %821
    %823 = vrot.lane.b32.xlu0 %v141, 80
    %v824 = vpop.permute.xlu0 %823
    %v825 = vsel %vm152, %v822, 0
    %v827 = vsel %vm152, %v824, 0
    %829 = vmatprep.subr.mxu0 0.0
    %830 = vmatpush1.xpose.msra.mxu0 %v827
    %831 = vmatprep.subr.mxu0 0.0
    %832 = vmatpush1.xpose.msra.mxu0 0.0
    %833 = vmatprep.subr.mxu0 0.0
    %834 = vmatpush1.xpose.msra.mxu0 0.0
    %835 = vmatprep.subr.mxu0 0.0
    %836 = vmatpush1.xpose.msra.mxu0 0.0
    %837 = vmatprep.subr.mxu0 0.0
    %838 = vmatpush1.xpose.msra.mxu0 0.0
    %839 = vmatprep.subr.mxu0 0.0
    %840 = vmatpush1.xpose.msra.mxu0 0.0
    %841 = vmatprep.subr.mxu0 0.0
    %842 = vmatpush1.xpose.msra.mxu0 0.0
    %843 = vmatprep.subr.mxu0 0.0
    %844 = vmatpush1.xpose.msra.mxu0 0.0
    %845 = vmatprep.subr.mxu0 0.0
    %846 = vmatpush1.xpose.msra.mxu0 0.0
    %847 = vmatprep.subr.mxu0 0.0
    %848 = vmatpush1.xpose.msra.mxu0 0.0
    %849 = vmatprep.subr.mxu0 0.0
    %850 = vmatpush1.xpose.msra.mxu0 0.0
    %851 = vmatprep.subr.mxu0 0.0
    %852 = vmatpush1.xpose.msra.mxu0 0.0
    %853 = vmatprep.subr.mxu0 0.0
    %854 = vmatpush1.xpose.msra.mxu0 0.0
    %855 = vmatprep.subr.mxu0 0.0
    %856 = vmatpush1.xpose.msra.mxu0 0.0
    %857 = vmatprep.subr.mxu0 0.0
    %858 = vmatpush1.xpose.msra.mxu0 0.0
    %859 = vmatprep.subr.mxu0 0.0
    %860 = vmatpush1.xpose.msra.mxu0 0.0
    %861 = vmatprep.subr.mxu0 0.0
    %862 = vmatpush1.xpose.msra.mxu0 0.0
    %863 = vmatprep.subr.mxu0 0.0
    %864 = vmatpush1.xpose.msra.mxu0 0.0
    %865 = vmatprep.subr.mxu0 0.0
    %866 = vmatpush1.xpose.msra.mxu0 0.0
    %867 = vmatprep.subr.mxu0 0.0
    %868 = vmatpush1.xpose.msra.mxu0 0.0
    %869 = vmatprep.subr.mxu0 0.0
    %870 = vmatpush1.xpose.msra.mxu0 0.0
    %871 = vmatprep.subr.mxu0 0.0
    %872 = vmatpush1.xpose.msra.mxu0 0.0
    %873 = vmatprep.subr.mxu0 0.0
    %874 = vmatpush1.xpose.msra.mxu0 0.0
    %875 = vmatprep.subr.mxu0 0.0
    %876 = vmatpush1.xpose.msra.mxu0 0.0
    %877 = vmatprep.subr.mxu0 0.0
    %878 = vmatpush1.xpose.msra.mxu0 0.0
    %879 = vmatprep.subr.mxu0 0.0
    %880 = vmatpush1.xpose.msra.mxu0 0.0
    %881 = vmatprep.subr.mxu0 0.0
    %882 = vmatpush1.xpose.msra.mxu0 0.0
    %883 = vmatprep.subr.mxu0 0.0
    %884 = vmatpush1.xpose.msra.mxu0 0.0
    %885 = vmatprep.subr.mxu0 0.0
    %886 = vmatpush1.xpose.msra.mxu0 0.0
    %887 = vmatprep.subr.mxu0 0.0
    %888 = vmatpush1.xpose.msra.mxu0 0.0
    %889 = vmatprep.subr.mxu0 0.0
    %890 = vmatpush1.xpose.msra.mxu0 0.0
    %891 = vmatprep.subr.mxu0 0.0
    %892 = vmatpush1.xpose.msra.mxu0 0.0
    %893 = vmatprep.mubr.f32.mxu0 0.0
    %894 = vmatmul.mubr.f32.gmra.mrb[0].mxu0 %v825
    %v895 = vpop.f32.mrb[0].mxu0
    %v896 = vadd.f32 0.0, %v895
    %v897 = vpop.f32.mrb[0].mxu0
    %898 = vdwg.mxu0
    %899 = vrot.lane.b32.xlu0 %v146, 112
    %v900 = vpop.permute.xlu0 %899
    %901 = vrot.lane.b32.xlu0 %v146, 80
    %v902 = vpop.permute.xlu0 %901
    %v903 = vsel %vm152, %v900, 0
    %v905 = vsel %vm152, %v902, 0
    %907 = vmatprep.subr.mxu0 0.0
    %908 = vmatpush1.xpose.msra.mxu0 %v905
    %909 = vmatprep.subr.mxu0 0.0
    %910 = vmatpush1.xpose.msra.mxu0 0.0
    %911 = vmatprep.subr.mxu0 0.0
    %912 = vmatpush1.xpose.msra.mxu0 0.0
    %913 = vmatprep.subr.mxu0 0.0
    %914 = vmatpush1.xpose.msra.mxu0 0.0
    %915 = vmatprep.subr.mxu0 0.0
    %916 = vmatpush1.xpose.msra.mxu0 0.0
    %917 = vmatprep.subr.mxu0 0.0
    %918 = vmatpush1.xpose.msra.mxu0 0.0
    %919 = vmatprep.subr.mxu0 0.0
    %920 = vmatpush1.xpose.msra.mxu0 0.0
    %921 = vmatprep.subr.mxu0 0.0
    %922 = vmatpush1.xpose.msra.mxu0 0.0
    %923 = vmatprep.subr.mxu0 0.0
    %924 = vmatpush1.xpose.msra.mxu0 0.0
    %925 = vmatprep.subr.mxu0 0.0
    %926 = vmatpush1.xpose.msra.mxu0 0.0
    %927 = vmatprep.subr.mxu0 0.0
    %928 = vmatpush1.xpose.msra.mxu0 0.0
    %929 = vmatprep.subr.mxu0 0.0
    %930 = vmatpush1.xpose.msra.mxu0 0.0
    %931 = vmatprep.subr.mxu0 0.0
    %932 = vmatpush1.xpose.msra.mxu0 0.0
    %933 = vmatprep.subr.mxu0 0.0
    %934 = vmatpush1.xpose.msra.mxu0 0.0
    %935 = vmatprep.subr.mxu0 0.0
    %936 = vmatpush1.xpose.msra.mxu0 0.0
    %937 = vmatprep.subr.mxu0 0.0
    %938 = vmatpush1.xpose.msra.mxu0 0.0
    %939 = vmatprep.subr.mxu0 0.0
    %940 = vmatpush1.xpose.msra.mxu0 0.0
    %941 = vmatprep.subr.mxu0 0.0
    %942 = vmatpush1.xpose.msra.mxu0 0.0
    %943 = vmatprep.subr.mxu0 0.0
    %944 = vmatpush1.xpose.msra.mxu0 0.0
    %945 = vmatprep.subr.mxu0 0.0
    %946 = vmatpush1.xpose.msra.mxu0 0.0
    %947 = vmatprep.subr.mxu0 0.0
    %948 = vmatpush1.xpose.msra.mxu0 0.0
    %949 = vmatprep.subr.mxu0 0.0
    %950 = vmatpush1.xpose.msra.mxu0 0.0
    %951 = vmatprep.subr.mxu0 0.0
    %952 = vmatpush1.xpose.msra.mxu0 0.0
    %953 = vmatprep.subr.mxu0 0.0
    %954 = vmatpush1.xpose.msra.mxu0 0.0
    %955 = vmatprep.subr.mxu0 0.0
    %956 = vmatpush1.xpose.msra.mxu0 0.0
    %957 = vmatprep.subr.mxu0 0.0
    %958 = vmatpush1.xpose.msra.mxu0 0.0
    %959 = vmatprep.subr.mxu0 0.0
    %960 = vmatpush1.xpose.msra.mxu0 0.0
    %961 = vmatprep.subr.mxu0 0.0
    %962 = vmatpush1.xpose.msra.mxu0 0.0
    %963 = vmatprep.subr.mxu0 0.0
    %964 = vmatpush1.xpose.msra.mxu0 0.0
    %965 = vmatprep.subr.mxu0 0.0
    %966 = vmatpush1.xpose.msra.mxu0 0.0
    %967 = vmatprep.subr.mxu0 0.0
    %968 = vmatpush1.xpose.msra.mxu0 0.0
    %969 = vmatprep.subr.mxu0 0.0
    %970 = vmatpush1.xpose.msra.mxu0 0.0
    %971 = vmatprep.mubr.f32.mxu0 0.0
    %972 = vmatmul.mubr.f32.gmra.mrb[0].mxu0 %v903
    %v973 = vpop.f32.mrb[0].mxu0
    %v974 = vadd.f32 0.0, %v973
    %v975 = vpop.f32.mrb[0].mxu0
    %976 = vdwg.mxu0
    %v977 = vsel %vm152, %v896, -inf
    %978 = vmax.xlane.f32.xlu0 %v977
    %v979 = vpop.xlane.xlu0 %978
    %v980 = vsel %vm152, %v974, -inf
    %981 = vmax.xlane.f32.xlu0 %v980
    %v982 = vpop.xlane.xlu0 %981
    %v983 = vsub.f32 %v896, %v979
    %v984 = vsub.f32 %v974, %v982
    %v985 = vmul.f32 %v983, 1.442695
    %v986 = vpow.pop %v985
    %v987 = vmul.f32 %v984, 1.442695
    %v988 = vpow.pop %v987
    %v989 = vsel %vm152, %v986, 0.0
    %990 = vadd.xlane.f32.xlu0 %v989
    %v991 = vpop.xlane.xlu0 %990
    %v992 = vsel %vm152, %v988, 0.0
    %993 = vadd.xlane.f32.xlu0 %v992
    %v994 = vpop.xlane.xlu0 %993
    %v995 = vrcp.pop %v991
    %v996 = vrcp.pop %v994
    %v997 = vmul.f32 %v986, %v995
    %v998 = vmul.f32 %v988, %v996
    %999 = vrot.lane.b32.xlu0 %v141, 48
    %v1000 = vpop.permute.xlu0 %999
    %v1003 = vsel %vm152, %v997, 0
    %1005 = vmatprep.subr.mxu0 0.0
    %1006 = vmatpush1.msra.mxu0 %v1000
    %1007 = vmatprep.subr.mxu0 0.0
    %1008 = vmatpush1.msra.mxu0 0.0
    %1009 = vmatprep.subr.mxu0 0.0
    %1010 = vmatpush1.msra.mxu0 0.0
    %1011 = vmatprep.subr.mxu0 0.0
    %1012 = vmatpush1.msra.mxu0 0.0
    %1013 = vmatprep.subr.mxu0 0.0
    %1014 = vmatpush1.msra.mxu0 0.0
    %1015 = vmatprep.subr.mxu0 0.0
    %1016 = vmatpush1.msra.mxu0 0.0
    %1017 = vmatprep.subr.mxu0 0.0
    %1018 = vmatpush1.msra.mxu0 0.0
    %1019 = vmatprep.subr.mxu0 0.0
    %1020 = vmatpush1.msra.mxu0 0.0
    %1021 = vmatprep.subr.mxu0 0.0
    %1022 = vmatpush1.msra.mxu0 0.0
    %1023 = vmatprep.subr.mxu0 0.0
    %1024 = vmatpush1.msra.mxu0 0.0
    %1025 = vmatprep.subr.mxu0 0.0
    %1026 = vmatpush1.msra.mxu0 0.0
    %1027 = vmatprep.subr.mxu0 0.0
    %1028 = vmatpush1.msra.mxu0 0.0
    %1029 = vmatprep.subr.mxu0 0.0
    %1030 = vmatpush1.msra.mxu0 0.0
    %1031 = vmatprep.subr.mxu0 0.0
    %1032 = vmatpush1.msra.mxu0 0.0
    %1033 = vmatprep.subr.mxu0 0.0
    %1034 = vmatpush1.msra.mxu0 0.0
    %1035 = vmatprep.subr.mxu0 0.0
    %1036 = vmatpush1.msra.mxu0 0.0
    %1037 = vmatprep.subr.mxu0 0.0
    %1038 = vmatpush1.msra.mxu0 0.0
    %1039 = vmatprep.subr.mxu0 0.0
    %1040 = vmatpush1.msra.mxu0 0.0
    %1041 = vmatprep.subr.mxu0 0.0
    %1042 = vmatpush1.msra.mxu0 0.0
    %1043 = vmatprep.subr.mxu0 0.0
    %1044 = vmatpush1.msra.mxu0 0.0
    %1045 = vmatprep.subr.mxu0 0.0
    %1046 = vmatpush1.msra.mxu0 0.0
    %1047 = vmatprep.subr.mxu0 0.0
    %1048 = vmatpush1.msra.mxu0 0.0
    %1049 = vmatprep.subr.mxu0 0.0
    %1050 = vmatpush1.msra.mxu0 0.0
    %1051 = vmatprep.subr.mxu0 0.0
    %1052 = vmatpush1.msra.mxu0 0.0
    %1053 = vmatprep.subr.mxu0 0.0
    %1054 = vmatpush1.msra.mxu0 0.0
    %1055 = vmatprep.subr.mxu0 0.0
    %1056 = vmatpush1.msra.mxu0 0.0
    %1057 = vmatprep.subr.mxu0 0.0
    %1058 = vmatpush1.msra.mxu0 0.0
    %1059 = vmatprep.subr.mxu0 0.0
    %1060 = vmatpush1.msra.mxu0 0.0
    %1061 = vmatprep.subr.mxu0 0.0
    %1062 = vmatpush1.msra.mxu0 0.0
    %1063 = vmatprep.subr.mxu0 0.0
    %1064 = vmatpush1.msra.mxu0 0.0
    %1065 = vmatprep.subr.mxu0 0.0
    %1066 = vmatpush1.msra.mxu0 0.0
    %1067 = vmatprep.subr.mxu0 0.0
    %1068 = vmatpush1.msra.mxu0 0.0
    %1069 = vmatprep.mubr.f32.mxu0 0.0
    %1070 = vmatmul.mubr.f32.gmra.mrb[0].mxu0 %v1003
    %v1071 = vpop.f32.mrb[0].mxu0
    %v1072 = vadd.f32 0.0, %v1071
    %v1073 = vpop.f32.mrb[0].mxu0
    %1074 = vdwg.mxu0
    %1075 = vrot.lane.b32.xlu0 %v146, 48
    %v1076 = vpop.permute.xlu0 %1075
    %v1079 = vsel %vm152, %v998, 0
    %1081 = vmatprep.subr.mxu0 0.0
    %1082 = vmatpush1.msra.mxu0 %v1076
    %1083 = vmatprep.subr.mxu0 0.0
    %1084 = vmatpush1.msra.mxu0 0.0
    %1085 = vmatprep.subr.mxu0 0.0
    %1086 = vmatpush1.msra.mxu0 0.0
    %1087 = vmatprep.subr.mxu0 0.0
    %1088 = vmatpush1.msra.mxu0 0.0
    %1089 = vmatprep.subr.mxu0 0.0
    %1090 = vmatpush1.msra.mxu0 0.0
    %1091 = vmatprep.subr.mxu0 0.0
    %1092 = vmatpush1.msra.mxu0 0.0
    %1093 = vmatprep.subr.mxu0 0.0
    %1094 = vmatpush1.msra.mxu0 0.0
    %1095 = vmatprep.subr.mxu0 0.0
    %1096 = vmatpush1.msra.mxu0 0.0
    %1097 = vmatprep.subr.mxu0 0.0
    %1098 = vmatpush1.msra.mxu0 0.0
    %1099 = vmatprep.subr.mxu0 0.0
    %1100 = vmatpush1.msra.mxu0 0.0
    %1101 = vmatprep.subr.mxu0 0.0
    %1102 = vmatpush1.msra.mxu0 0.0
    %1103 = vmatprep.subr.mxu0 0.0
    %1104 = vmatpush1.msra.mxu0 0.0
    %1105 = vmatprep.subr.mxu0 0.0
    %1106 = vmatpush1.msra.mxu0 0.0
    %1107 = vmatprep.subr.mxu0 0.0
    %1108 = vmatpush1.msra.mxu0 0.0
    %1109 = vmatprep.subr.mxu0 0.0
    %1110 = vmatpush1.msra.mxu0 0.0
    %1111 = vmatprep.subr.mxu0 0.0
    %1112 = vmatpush1.msra.mxu0 0.0
    %1113 = vmatprep.subr.mxu0 0.0
    %1114 = vmatpush1.msra.mxu0 0.0
    %1115 = vmatprep.subr.mxu0 0.0
    %1116 = vmatpush1.msra.mxu0 0.0
    %1117 = vmatprep.subr.mxu0 0.0
    %1118 = vmatpush1.msra.mxu0 0.0
    %1119 = vmatprep.subr.mxu0 0.0
    %1120 = vmatpush1.msra.mxu0 0.0
    %1121 = vmatprep.subr.mxu0 0.0
    %1122 = vmatpush1.msra.mxu0 0.0
    %1123 = vmatprep.subr.mxu0 0.0
    %1124 = vmatpush1.msra.mxu0 0.0
    %1125 = vmatprep.subr.mxu0 0.0
    %1126 = vmatpush1.msra.mxu0 0.0
    %1127 = vmatprep.subr.mxu0 0.0
    %1128 = vmatpush1.msra.mxu0 0.0
    %1129 = vmatprep.subr.mxu0 0.0
    %1130 = vmatpush1.msra.mxu0 0.0
    %1131 = vmatprep.subr.mxu0 0.0
    %1132 = vmatpush1.msra.mxu0 0.0
    %1133 = vmatprep.subr.mxu0 0.0
    %1134 = vmatpush1.msra.mxu0 0.0
    %1135 = vmatprep.subr.mxu0 0.0
    %1136 = vmatpush1.msra.mxu0 0.0
    %1137 = vmatprep.subr.mxu0 0.0
    %1138 = vmatpush1.msra.mxu0 0.0
    %1139 = vmatprep.subr.mxu0 0.0
    %1140 = vmatpush1.msra.mxu0 0.0
    %1141 = vmatprep.subr.mxu0 0.0
    %1142 = vmatpush1.msra.mxu0 0.0
    %1143 = vmatprep.subr.mxu0 0.0
    %1144 = vmatpush1.msra.mxu0 0.0
    %1145 = vmatprep.mubr.f32.mxu0 0.0
    %1146 = vmatmul.mubr.f32.gmra.mrb[0].mxu0 %v1079
    %v1147 = vpop.f32.mrb[0].mxu0
    %v1148 = vadd.f32 0.0, %v1147
    %v1149 = vpop.f32.mrb[0].mxu0
    %1150 = vdwg.mxu0
    %1153 = vrot.lane.b32.xlu0 %v1072, 16
    %v1154 = vpop.permute.xlu0 %1153
    %1155 = vrot.lane.b32.xlu0 %v1148, 16
    %v1156 = vpop.permute.xlu0 %1155
    %vm1159 = vcmask 195712
    %1160 = vst.msk [vmem:[#allocation2] sm:$0xff] %vm1159, %v1154
    %1161 = vst.msk [vmem:[#allocation2 + $0x8] sm:$0xff] %vm1159, %v1156
    %1162 = vrot.lane.b32.xlu0 %v141, 104
    %v1163 = vpop.permute.xlu0 %1162
    %1164 = vrot.lane.b32.xlu0 %v141, 72
    %v1165 = vpop.permute.xlu0 %1164
    %v1166 = vsel %vm152, %v1163, 0
    %v1168 = vsel %vm152, %v1165, 0
    %1170 = vmatprep.subr.mxu0 0.0
    %1171 = vmatpush1.xpose.msra.mxu0 %v1168
    %1172 = vmatprep.subr.mxu0 0.0
    %1173 = vmatpush1.xpose.msra.mxu0 0.0
    %1174 = vmatprep.subr.mxu0 0.0
    %1175 = vmatpush1.xpose.msra.mxu0 0.0
    %1176 = vmatprep.subr.mxu0 0.0
    %1177 = vmatpush1.xpose.msra.mxu0 0.0
    %1178 = vmatprep.subr.mxu0 0.0
    %1179 = vmatpush1.xpose.msra.mxu0 0.0
    %1180 = vmatprep.subr.mxu0 0.0
    %1181 = vmatpush1.xpose.msra.mxu0 0.0
    %1182 = vmatprep.subr.mxu0 0.0
    %1183 = vmatpush1.xpose.msra.mxu0 0.0
    %1184 = vmatprep.subr.mxu0 0.0
    %1185 = vmatpush1.xpose.msra.mxu0 0.0
    %1186 = vmatprep.subr.mxu0 0.0
    %1187 = vmatpush1.xpose.msra.mxu0 0.0
    %1188 = vmatprep.subr.mxu0 0.0
    %1189 = vmatpush1.xpose.msra.mxu0 0.0
    %1190 = vmatprep.subr.mxu0 0.0
    %1191 = vmatpush1.xpose.msra.mxu0 0.0
    %1192 = vmatprep.subr.mxu0 0.0
    %1193 = vmatpush1.xpose.msra.mxu0 0.0
    %1194 = vmatprep.subr.mxu0 0.0
    %1195 = vmatpush1.xpose.msra.mxu0 0.0
    %1196 = vmatprep.subr.mxu0 0.0
    %1197 = vmatpush1.xpose.msra.mxu0 0.0
    %1198 = vmatprep.subr.mxu0 0.0
    %1199 = vmatpush1.xpose.msra.mxu0 0.0
    %1200 = vmatprep.subr.mxu0 0.0
    %1201 = vmatpush1.xpose.msra.mxu0 0.0
    %1202 = vmatprep.subr.mxu0 0.0
    %1203 = vmatpush1.xpose.msra.mxu0 0.0
    %1204 = vmatprep.subr.mxu0 0.0
    %1205 = vmatpush1.xpose.msra.mxu0 0.0
    %1206 = vmatprep.subr.mxu0 0.0
    %1207 = vmatpush1.xpose.msra.mxu0 0.0
    %1208 = vmatprep.subr.mxu0 0.0
    %1209 = vmatpush1.xpose.msra.mxu0 0.0
    %1210 = vmatprep.subr.mxu0 0.0
    %1211 = vmatpush1.xpose.msra.mxu0 0.0
    %1212 = vmatprep.subr.mxu0 0.0
    %1213 = vmatpush1.xpose.msra.mxu0 0.0
    %1214 = vmatprep.subr.mxu0 0.0
    %1215 = vmatpush1.xpose.msra.mxu0 0.0
    %1216 = vmatprep.subr.mxu0 0.0
    %1217 = vmatpush1.xpose.msra.mxu0 0.0
    %1218 = vmatprep.subr.mxu0 0.0
    %1219 = vmatpush1.xpose.msra.mxu0 0.0
    %1220 = vmatprep.subr.mxu0 0.0
    %1221 = vmatpush1.xpose.msra.mxu0 0.0
    %1222 = vmatprep.subr.mxu0 0.0
    %1223 = vmatpush1.xpose.msra.mxu0 0.0
    %1224 = vmatprep.subr.mxu0 0.0
    %1225 = vmatpush1.xpose.msra.mxu0 0.0
    %1226 = vmatprep.subr.mxu0 0.0
    %1227 = vmatpush1.xpose.msra.mxu0 0.0
    %1228 = vmatprep.subr.mxu0 0.0
    %1229 = vmatpush1.xpose.msra.mxu0 0.0
    %1230 = vmatprep.subr.mxu0 0.0
    %1231 = vmatpush1.xpose.msra.mxu0 0.0
    %1232 = vmatprep.subr.mxu0 0.0
    %1233 = vmatpush1.xpose.msra.mxu0 0.0
    %1234 = vmatprep.mubr.f32.mxu0 0.0
    %1235 = vmatmul.mubr.f32.gmra.mrb[0].mxu0 %v1166
    %v1236 = vpop.f32.mrb[0].mxu0
    %v1237 = vadd.f32 0.0, %v1236
    %v1238 = vpop.f32.mrb[0].mxu0
    %1239 = vdwg.mxu0
    %1240 = vrot.lane.b32.xlu0 %v146, 104
    %v1241 = vpop.permute.xlu0 %1240
    %1242 = vrot.lane.b32.xlu0 %v146, 72
    %v1243 = vpop.permute.xlu0 %1242
    %v1244 = vsel %vm152, %v1241, 0
    %v1246 = vsel %vm152, %v1243, 0
    %1248 = vmatprep.subr.mxu0 0.0
    %1249 = vmatpush1.xpose.msra.mxu0 %v1246
    %1250 = vmatprep.subr.mxu0 0.0
    %1251 = vmatpush1.xpose.msra.mxu0 0.0
    %1252 = vmatprep.subr.mxu0 0.0
    %1253 = vmatpush1.xpose.msra.mxu0 0.0
    %1254 = vmatprep.subr.mxu0 0.0
    %1255 = vmatpush1.xpose.msra.mxu0 0.0
    %1256 = vmatprep.subr.mxu0 0.0
    %1257 = vmatpush1.xpose.msra.mxu0 0.0
    %1258 = vmatprep.subr.mxu0 0.0
    %1259 = vmatpush1.xpose.msra.mxu0 0.0
    %1260 = vmatprep.subr.mxu0 0.0
    %1261 = vmatpush1.xpose.msra.mxu0 0.0
    %1262 = vmatprep.subr.mxu0 0.0
    %1263 = vmatpush1.xpose.msra.mxu0 0.0
    %1264 = vmatprep.subr.mxu0 0.0
    %1265 = vmatpush1.xpose.msra.mxu0 0.0
    %1266 = vmatprep.subr.mxu0 0.0
    %1267 = vmatpush1.xpose.msra.mxu0 0.0
    %1268 = vmatprep.subr.mxu0 0.0
    %1269 = vmatpush1.xpose.msra.mxu0 0.0
    %1270 = vmatprep.subr.mxu0 0.0
    %1271 = vmatpush1.xpose.msra.mxu0 0.0
    %1272 = vmatprep.subr.mxu0 0.0
    %1273 = vmatpush1.xpose.msra.mxu0 0.0
    %1274 = vmatprep.subr.mxu0 0.0
    %1275 = vmatpush1.xpose.msra.mxu0 0.0
    %1276 = vmatprep.subr.mxu0 0.0
    %1277 = vmatpush1.xpose.msra.mxu0 0.0
    %1278 = vmatprep.subr.mxu0 0.0
    %1279 = vmatpush1.xpose.msra.mxu0 0.0
    %1280 = vmatprep.subr.mxu0 0.0
    %1281 = vmatpush1.xpose.msra.mxu0 0.0
    %1282 = vmatprep.subr.mxu0 0.0
    %1283 = vmatpush1.xpose.msra.mxu0 0.0
    %1284 = vmatprep.subr.mxu0 0.0
    %1285 = vmatpush1.xpose.msra.mxu0 0.0
    %1286 = vmatprep.subr.mxu0 0.0
    %1287 = vmatpush1.xpose.msra.mxu0 0.0
    %1288 = vmatprep.subr.mxu0 0.0
    %1289 = vmatpush1.xpose.msra.mxu0 0.0
    %1290 = vmatprep.subr.mxu0 0.0
    %1291 = vmatpush1.xpose.msra.mxu0 0.0
    %1292 = vmatprep.subr.mxu0 0.0
    %1293 = vmatpush1.xpose.msra.mxu0 0.0
    %1294 = vmatprep.subr.mxu0 0.0
    %1295 = vmatpush1.xpose.msra.mxu0 0.0
    %1296 = vmatprep.subr.mxu0 0.0
    %1297 = vmatpush1.xpose.msra.mxu0 0.0
    %1298 = vmatprep.subr.mxu0 0.0
    %1299 = vmatpush1.xpose.msra.mxu0 0.0
    %1300 = vmatprep.subr.mxu0 0.0
    %1301 = vmatpush1.xpose.msra.mxu0 0.0
    %1302 = vmatprep.subr.mxu0 0.0
    %1303 = vmatpush1.xpose.msra.mxu0 0.0
    %1304 = vmatprep.subr.mxu0 0.0
    %1305 = vmatpush1.xpose.msra.mxu0 0.0
    %1306 = vmatprep.subr.mxu0 0.0
    %1307 = vmatpush1.xpose.msra.mxu0 0.0
    %1308 = vmatprep.subr.mxu0 0.0
    %1309 = vmatpush1.xpose.msra.mxu0 0.0
    %1310 = vmatprep.subr.mxu0 0.0
    %1311 = vmatpush1.xpose.msra.mxu0 0.0
    %1312 = vmatprep.mubr.f32.mxu0 0.0
    %1313 = vmatmul.mubr.f32.gmra.mrb[0].mxu0 %v1244
    %v1314 = vpop.f32.mrb[0].mxu0
    %v1315 = vadd.f32 0.0, %v1314
    %v1316 = vpop.f32.mrb[0].mxu0
    %1317 = vdwg.mxu0
    %v1318 = vsel %vm152, %v1237, -inf
    %1319 = vmax.xlane.f32.xlu0 %v1318
    %v1320 = vpop.xlane.xlu0 %1319
    %v1321 = vsel %vm152, %v1315, -inf
    %1322 = vmax.xlane.f32.xlu0 %v1321
    %v1323 = vpop.xlane.xlu0 %1322
    %v1324 = vsub.f32 %v1237, %v1320
    %v1325 = vsub.f32 %v1315, %v1323
    %v1326 = vmul.f32 %v1324, 1.442695
    %v1327 = vpow.pop %v1326
    %v1328 = vmul.f32 %v1325, 1.442695
    %v1329 = vpow.pop %v1328
    %v1330 = vsel %vm152, %v1327, 0.0
    %1331 = vadd.xlane.f32.xlu0 %v1330
    %v1332 = vpop.xlane.xlu0 %1331
    %v1333 = vsel %vm152, %v1329, 0.0
    %1334 = vadd.xlane.f32.xlu0 %v1333
    %v1335 = vpop.xlane.xlu0 %1334
    %v1336 = vrcp.pop %v1332
    %v1337 = vrcp.pop %v1335
    %v1338 = vmul.f32 %v1327, %v1336
    %v1339 = vmul.f32 %v1329, %v1337
    %1340 = vrot.lane.b32.xlu0 %v141, 40
    %v1341 = vpop.permute.xlu0 %1340
    %v1344 = vsel %vm152, %v1338, 0
    %1346 = vmatprep.subr.mxu0 0.0
    %1347 = vmatpush1.msra.mxu0 %v1341
    %1348 = vmatprep.subr.mxu0 0.0
    %1349 = vmatpush1.msra.mxu0 0.0
    %1350 = vmatprep.subr.mxu0 0.0
    %1351 = vmatpush1.msra.mxu0 0.0
    %1352 = vmatprep.subr.mxu0 0.0
    %1353 = vmatpush1.msra.mxu0 0.0
    %1354 = vmatprep.subr.mxu0 0.0
    %1355 = vmatpush1.msra.mxu0 0.0
    %1356 = vmatprep.subr.mxu0 0.0
    %1357 = vmatpush1.msra.mxu0 0.0
    %1358 = vmatprep.subr.mxu0 0.0
    %1359 = vmatpush1.msra.mxu0 0.0
    %1360 = vmatprep.subr.mxu0 0.0
    %1361 = vmatpush1.msra.mxu0 0.0
    %1362 = vmatprep.subr.mxu0 0.0
    %1363 = vmatpush1.msra.mxu0 0.0
    %1364 = vmatprep.subr.mxu0 0.0
    %1365 = vmatpush1.msra.mxu0 0.0
    %1366 = vmatprep.subr.mxu0 0.0
    %1367 = vmatpush1.msra.mxu0 0.0
    %1368 = vmatprep.subr.mxu0 0.0
    %1369 = vmatpush1.msra.mxu0 0.0
    %1370 = vmatprep.subr.mxu0 0.0
    %1371 = vmatpush1.msra.mxu0 0.0
    %1372 = vmatprep.subr.mxu0 0.0
    %1373 = vmatpush1.msra.mxu0 0.0
    %1374 = vmatprep.subr.mxu0 0.0
    %1375 = vmatpush1.msra.mxu0 0.0
    %1376 = vmatprep.subr.mxu0 0.0
    %1377 = vmatpush1.msra.mxu0 0.0
    %1378 = vmatprep.subr.mxu0 0.0
    %1379 = vmatpush1.msra.mxu0 0.0
    %1380 = vmatprep.subr.mxu0 0.0
    %1381 = vmatpush1.msra.mxu0 0.0
    %1382 = vmatprep.subr.mxu0 0.0
    %1383 = vmatpush1.msra.mxu0 0.0
    %1384 = vmatprep.subr.mxu0 0.0
    %1385 = vmatpush1.msra.mxu0 0.0
    %1386 = vmatprep.subr.mxu0 0.0
    %1387 = vmatpush1.msra.mxu0 0.0
    %1388 = vmatprep.subr.mxu0 0.0
    %1389 = vmatpush1.msra.mxu0 0.0
    %1390 = vmatprep.subr.mxu0 0.0
    %1391 = vmatpush1.msra.mxu0 0.0
    %1392 = vmatprep.subr.mxu0 0.0
    %1393 = vmatpush1.msra.mxu0 0.0
    %1394 = vmatprep.subr.mxu0 0.0
    %1395 = vmatpush1.msra.mxu0 0.0
    %1396 = vmatprep.subr.mxu0 0.0
    %1397 = vmatpush1.msra.mxu0 0.0
    %1398 = vmatprep.subr.mxu0 0.0
    %1399 = vmatpush1.msra.mxu0 0.0
    %1400 = vmatprep.subr.mxu0 0.0
    %1401 = vmatpush1.msra.mxu0 0.0
    %1402 = vmatprep.subr.mxu0 0.0
    %1403 = vmatpush1.msra.mxu0 0.0
    %1404 = vmatprep.subr.mxu0 0.0
    %1405 = vmatpush1.msra.mxu0 0.0
    %1406 = vmatprep.subr.mxu0 0.0
    %1407 = vmatpush1.msra.mxu0 0.0
    %1408 = vmatprep.subr.mxu0 0.0
    %1409 = vmatpush1.msra.mxu0 0.0
    %1410 = vmatprep.mubr.f32.mxu0 0.0
    %1411 = vmatmul.mubr.f32.gmra.mrb[0].mxu0 %v1344
    %v1412 = vpop.f32.mrb[0].mxu0
    %v1413 = vadd.f32 0.0, %v1412
    %v1414 = vpop.f32.mrb[0].mxu0
    %1415 = vdwg.mxu0
    %1416 = vrot.lane.b32.xlu0 %v146, 40
    %v1417 = vpop.permute.xlu0 %1416
    %v1420 = vsel %vm152, %v1339, 0
    %1422 = vmatprep.subr.mxu0 0.0
    %1423 = vmatpush1.msra.mxu0 %v1417
    %1424 = vmatprep.subr.mxu0 0.0
    %1425 = vmatpush1.msra.mxu0 0.0
    %1426 = vmatprep.subr.mxu0 0.0
    %1427 = vmatpush1.msra.mxu0 0.0
    %1428 = vmatprep.subr.mxu0 0.0
    %1429 = vmatpush1.msra.mxu0 0.0
    %1430 = vmatprep.subr.mxu0 0.0
    %1431 = vmatpush1.msra.mxu0 0.0
    %1432 = vmatprep.subr.mxu0 0.0
    %1433 = vmatpush1.msra.mxu0 0.0
    %1434 = vmatprep.subr.mxu0 0.0
    %1435 = vmatpush1.msra.mxu0 0.0
    %1436 = vmatprep.subr.mxu0 0.0
    %1437 = vmatpush1.msra.mxu0 0.0
    %1438 = vmatprep.subr.mxu0 0.0
    %1439 = vmatpush1.msra.mxu0 0.0
    %1440 = vmatprep.subr.mxu0 0.0
    %1441 = vmatpush1.msra.mxu0 0.0
    %1442 = vmatprep.subr.mxu0 0.0
    %1443 = vmatpush1.msra.mxu0 0.0
    %1444 = vmatprep.subr.mxu0 0.0
    %1445 = vmatpush1.msra.mxu0 0.0
    %1446 = vmatprep.subr.mxu0 0.0
    %1447 = vmatpush1.msra.mxu0 0.0
    %1448 = vmatprep.subr.mxu0 0.0
    %1449 = vmatpush1.msra.mxu0 0.0
    %1450 = vmatprep.subr.mxu0 0.0
    %1451 = vmatpush1.msra.mxu0 0.0
    %1452 = vmatprep.subr.mxu0 0.0
    %1453 = vmatpush1.msra.mxu0 0.0
    %1454 = vmatprep.subr.mxu0 0.0
    %1455 = vmatpush1.msra.mxu0 0.0
    %1456 = vmatprep.subr.mxu0 0.0
    %1457 = vmatpush1.msra.mxu0 0.0
    %1458 = vmatprep.subr.mxu0 0.0
    %1459 = vmatpush1.msra.mxu0 0.0
    %1460 = vmatprep.subr.mxu0 0.0
    %1461 = vmatpush1.msra.mxu0 0.0
    %1462 = vmatprep.subr.mxu0 0.0
    %1463 = vmatpush1.msra.mxu0 0.0
    %1464 = vmatprep.subr.mxu0 0.0
    %1465 = vmatpush1.msra.mxu0 0.0
    %1466 = vmatprep.subr.mxu0 0.0
    %1467 = vmatpush1.msra.mxu0 0.0
    %1468 = vmatprep.subr.mxu0 0.0
    %1469 = vmatpush1.msra.mxu0 0.0
    %1470 = vmatprep.subr.mxu0 0.0
    %1471 = vmatpush1.msra.mxu0 0.0
    %1472 = vmatprep.subr.mxu0 0.0
    %1473 = vmatpush1.msra.mxu0 0.0
    %1474 = vmatprep.subr.mxu0 0.0
    %1475 = vmatpush1.msra.mxu0 0.0
    %1476 = vmatprep.subr.mxu0 0.0
    %1477 = vmatpush1.msra.mxu0 0.0
    %1478 = vmatprep.subr.mxu0 0.0
    %1479 = vmatpush1.msra.mxu0 0.0
    %1480 = vmatprep.subr.mxu0 0.0
    %1481 = vmatpush1.msra.mxu0 0.0
    %1482 = vmatprep.subr.mxu0 0.0
    %1483 = vmatpush1.msra.mxu0 0.0
    %1484 = vmatprep.subr.mxu0 0.0
    %1485 = vmatpush1.msra.mxu0 0.0
    %1486 = vmatprep.mubr.f32.mxu0 0.0
    %1487 = vmatmul.mubr.f32.gmra.mrb[0].mxu0 %v1420
    %v1488 = vpop.f32.mrb[0].mxu0
    %v1489 = vadd.f32 0.0, %v1488
    %v1490 = vpop.f32.mrb[0].mxu0
    %1491 = vdwg.mxu0
    %1494 = vrot.lane.b32.xlu0 %v1413, 24
    %v1495 = vpop.permute.xlu0 %1494
    %1496 = vrot.lane.b32.xlu0 %v1489, 24
    %v1497 = vpop.permute.xlu0 %1496
    %vm1500 = vcmask 261312
    %1501 = vst.msk [vmem:[#allocation2] sm:$0xff] %vm1500, %v1495
    %1502 = vst.msk [vmem:[#allocation2 + $0x8] sm:$0xff] %vm1500, %v1497
    %v1503 = vld [vmem:[#allocation2] sm:$0xff]
    %v1504 = vld [vmem:[#allocation2 + $0x8] sm:$0xff]
    %1505 = vst.msk [vmem:[#allocation9] sm:$0xff] %vm67, %v1503
    %1506 = vst.msk [vmem:[#allocation9 + $0x8] sm:$0xff] %vm67, %v1504
    // Predicated region
    $region26: #{tpu_custom_call.1} parent=1 // pred_check
      _
    $region27: #{tpu_custom_call.1} parent=1 // pred_check_branch
      %1508 = sbr.rel (0) target = $region29
    $region28: #{tpu_custom_call.1} parent=1 // pred_region
      %s1510 = ssub.s32 256, 256
      %1511 = vsyncadd [#allocation5], %s1510
      %s1512 = sshll.u32 [#allocation9], 4
      %s1513 = int_to_ptr.vmem [resolvable:$true] %s1512
      %1518 = dma.vmem_to_hbm [thread:$0]  %s1513, 256, %s3, [#allocation5], 128, 128, 8
    $region29: #{tpu_custom_call.1} parent=1 // pred_fallthru
      _
    // Predicated region
    $region30: #{tpu_custom_call.1} parent=1 // pred_check
      _
    $region31: #{tpu_custom_call.1} parent=1 // pred_check_branch
      %1520 = sbr.rel (0) target = $region33
    $region32: #{tpu_custom_call.1} parent=1 // pred_region
      %1521 = dma.done [#allocation5], 256
    $region33: #{tpu_custom_call.1} parent=1 // pred_fallthru
      _
    %1522 = vsyncpa [#allocation4], 1
    %1523 = vsyncpa [#allocation7], 1
    %1524 = vsyncpa [#allocation5], 1

</llo_original>
